<compile_context>
chip_gen: v6e
topology: v6e:2x2x1
jax: 0.10.0
libtpu: 0.0.40
codegen_flags: <defaults>
</compile_context>

<pallas_src>
import functools

import numpy as np
import jax
import jax.numpy as jnp
from jax import lax
from jax.experimental import pallas as pl
from jax.experimental.pallas import tpu as pltpu

EPS = 1e-6

# columns of the packed per-channel parameter array (shape (C, _NVEC))
(_N1W, _N1B, _B1A, _B1B, _B2A, _B2B, _BSCA, _B3, _BETA,
 _N2W, _N2B, _B4A, _B4B, _B5, _GAMMA, _NVEC) = range(16)

# slots of the stacked (7, C, C) 1x1-conv weight array ((Cout, Cin) layout)
_W1A, _W1B, _WSCA, _W3, _W4A, _W4B, _W5 = range(7)

_TAPS = tuple((dh, dw) for dh in (-1, 0, 1) for dw in (-1, 0, 1))


def _nafblock_kernel(x_ref, w_ref, ka_ref, kb_ref, vec_ref, mask_ref, out_ref,
                     *, H, W):
    """One batch element per grid step. Working layout: (C, H*W) --
    channels in sublanes, flattened spatial positions in lanes."""
    HW = H * W

    # Read every parameter ref exactly once (hoisted, no re-broadcasts).
    x0 = x_ref[0]            # (C, HW)
    vec = vec_ref[...]       # (C, _NVEC)  packed per-channel vectors
    ka = ka_ref[...]         # (C, 9)      depthwise taps, first gate half
    kb = kb_ref[...]         # (C, 9)      depthwise taps, second gate half
    mask = mask_ref[...]     # (9, HW)     border masks for the 9 dw taps

    def col(i):              # (C, 1) per-channel column, broadcasts over lanes
        return vec[:, i:i + 1]

    def layernorm(x, wi, bi):
        # LayerNorm2d: stats over the channel (sublane) axis, biased variance,
        # eps inside the sqrt; rsqrt runs on the EUP instead of a VPU divide.
        mu = jnp.mean(x, axis=0, keepdims=True)                    # (1, HW)
        var = jnp.mean((x - mu) * (x - mu), axis=0, keepdims=True)
        return (x - mu) * lax.rsqrt(var + EPS) * col(wi) + col(bi)

    def matmul(slot, x):
        # 1x1 conv as (Cout, Cin) @ (Cin, HW): output is lane-dense (HW lanes).
        return jnp.dot(w_ref[slot], x, preferred_element_type=jnp.float32)

    def dwconv3x3(x, k):
        # Depthwise 3x3, stride 1, zero-pad 1, on the flattened (C, HW) tile:
        # nine shifted accumulations via lane rotations (XLU) + border masks.
        acc = x * k[:, 4:5]                                        # centre tap
        for i, (dh, dw) in enumerate(_TAPS):
            if dh == 0 and dw == 0:
                continue
            s = dh * W + dw                                        # flat offset
            shifted = pltpu.roll(x, shift=(-s) % HW, axis=1)       # -> x[p + s]
            acc = acc + (shifted * mask[i:i + 1]) * k[:, i:i + 1]
        return acc

    # ---- branch 1: LN -> 1x1 (split) -> dw3x3 -> SimpleGate -> SCA -> 1x1 ----
    xn = layernorm(x0, _N1W, _N1B)
    xa = dwconv3x3(matmul(_W1A, xn) + col(_B1A), ka) + col(_B2A)
    xb = dwconv3x3(matmul(_W1B, xn) + col(_B1B), kb) + col(_B2B)
    xg = xa * xb                                   # SimpleGate (split weights)

    pooled = jnp.mean(xg, axis=1, keepdims=True)   # (C, 1) global average pool
    sca = matmul(_WSCA, pooled) + col(_BSCA)       # (C, 1) channel attention
    xs = xg * sca

    # conv3 + residual (dropout1 is Identity at drop_out_rate = 0)
    y = x0 + (matmul(_W3, xs) + col(_B3)) * col(_BETA)

    # ---- branch 2 (FFN): LN -> 1x1 (split) -> SimpleGate -> 1x1 -------------
    zn = layernorm(y, _N2W, _N2B)
    zg = (matmul(_W4A, zn) + col(_B4A)) * (matmul(_W4B, zn) + col(_B4B))
    out_ref[0] = y + (matmul(_W5, zg) + col(_B5)) * col(_GAMMA)


def nafblock_pallas(inp_nchw, P):
    """NAFBlock forward (NCHW in / NCHW out) via a fused Pallas TPU kernel.

    Assumes DW_Expand = FFN_Expand = 2 (the module defaults), so every 1x1
    conv weight is (C, C) after splitting the expanded dimension in half.
    """
    N, C, H, W = inp_nchw.shape
    HW = H * W
    assert HW % 128 == 0, "H*W must be a multiple of 128 for lane-dense tiles"
    C2 = P['w1'].shape[0]   # dw_channel
    Cf = P['w4'].shape[0]   # ffn_channel
    assert C2 == 2 * C and Cf == 2 * C, "kernel assumes DW_Expand=FFN_Expand=2"
    h2, hf = C2 // 2, Cf // 2
    f32 = jnp.float32

    # Stacked 1x1-conv weights, torch (Cout, Cin) layout, ready for W @ x.
    wstack = jnp.stack([
        P['w1'][:h2], P['w1'][h2:],          # conv1 split for SimpleGate
        P['wsca'], P['w3'],
        P['w4'][:hf], P['w4'][hf:],          # conv4 split for SimpleGate
        P['w5'],
    ]).astype(f32)                            # (7, C, C)

    # Depthwise 3x3 taps, flattened row-major, split into the two gate halves.
    dwk = P['w2'].reshape(C2, 9).astype(f32)
    dwka, dwkb = dwk[:h2], dwk[h2:]           # (C, 9) each

    # All per-channel vectors packed into one (C, _NVEC) array.
    cols = [None] * _NVEC
    cols[_N1W], cols[_N1B] = P['n1w'], P['n1b']
    cols[_B1A], cols[_B1B] = P['b1'][:h2], P['b1'][h2:]
    cols[_B2A], cols[_B2B] = P['b2'][:h2], P['b2'][h2:]
    cols[_BSCA], cols[_B3] = P['bsca'], P['b3']
    cols[_BETA] = P['beta'].reshape(-1)
    cols[_N2W], cols[_N2B] = P['n2w'], P['n2b']
    cols[_B4A], cols[_B4B] = P['b4'][:hf], P['b4'][hf:]
    cols[_B5] = P['b5']
    cols[_GAMMA] = P['gamma'].reshape(-1)
    vecs = jnp.stack([c.astype(f32) for c in cols], axis=1)   # (C, 15)

    # Border masks for the 9 depthwise taps (host-side, passed in once).
    rr = np.arange(HW) // W
    cc = np.arange(HW) % W
    masks = []
    for dh, dw in _TAPS:
        ok = ((rr + dh >= 0) & (rr + dh < H) & (cc + dw >= 0) & (cc + dw < W))
        masks.append(ok.astype(np.float32))
    dwmask = jnp.asarray(np.stack(masks))                      # (9, HW)

    # Channels-in-sublane / spatial-in-lane: just a reshape of NCHW.
    x_flat = inp_nchw.reshape(N, C, HW).astype(f32)

    def const_spec(a):
        nd = a.ndim
        return pl.BlockSpec(a.shape, lambda n, _nd=nd: (0,) * _nd)

    kernel = functools.partial(_nafblock_kernel, H=H, W=W)

    out = pl.pallas_call(
        kernel,
        out_shape=jax.ShapeDtypeStruct((N, C, HW), f32),
        grid=(N,),
        in_specs=[pl.BlockSpec((1, C, HW), lambda n: (n, 0, 0)),
                  const_spec(wstack), const_spec(dwka), const_spec(dwkb),
                  const_spec(vecs), const_spec(dwmask)],
        out_specs=pl.BlockSpec((1, C, HW), lambda n: (n, 0, 0)),
        compiler_params=pltpu.CompilerParams(
            dimension_semantics=("parallel",),      # megacore sharding on v7x
            vmem_limit_bytes=32 * 1024 * 1024),
    )(x_flat, wstack, dwka, dwkb, vecs, dwmask)

    return out.reshape(N, C, H, W)


# ------------------------- pure-JAX reference (NCHW) -------------------------
def ref_nafblock(inp, P):
    def ln(x, w, b):
        mu = jnp.mean(x, axis=1, keepdims=True)
        var = jnp.mean((x - mu) ** 2, axis=1, keepdims=True)
        y = (x - mu) / jnp.sqrt(var + EPS)
        return w[None, :, None, None] * y + b[None, :, None, None]

    def pw(x, w, b):  # torch-style 1x1 conv weight (Cout, Cin)
        return jnp.einsum('nchw,dc->ndhw', x, w) + b[None, :, None, None]

    def sg(x):
        h = x.shape[1] // 2
        return x[:, :h] * x[:, h:]

    x = ln(inp, P['n1w'], P['n1b'])
    x = pw(x, P['w1'], P['b1'])
    x = lax.conv_general_dilated(
        x, P['w2'][:, None, :, :], (1, 1), ((1, 1), (1, 1)),
        feature_group_count=P['w2'].shape[0],
        dimension_numbers=('NCHW', 'OIHW', 'NCHW')) + P['b2'][None, :, None, None]
    x = sg(x)
    pooled = jnp.mean(x, axis=(2, 3), keepdims=True)
    sca = jnp.einsum('nchw,dc->ndhw', pooled, P['wsca']) + P['bsca'][None, :, None, None]
    x = x * sca
    x = pw(x, P['w3'], P['b3'])
    y = inp + x * P['beta']
    x = ln(y, P['n2w'], P['n2b'])
    x = pw(x, P['w4'], P['b4'])
    x = sg(x)
    x = pw(x, P['w5'], P['b5'])
    return y + x * P['gamma']


# --------------------------------- main ---------------------------------
if __name__ == "__main__":
    N, C, H, W = 2, 4, 16, 16
    DW, FFN = 2, 2
    c2, cf = C * DW, C * FFN

    key = jax.random.PRNGKey(0)
    ks = jax.random.split(key, 20)

    def rnd(k, shape, scale=0.1):
        return (scale * jax.random.normal(k, shape)).astype(jnp.float32)

    # Deterministic synthetic parameters (torch-style shapes).  beta/gamma and
    # the LN affines are given non-trivial values so the full path is exercised
    # (PyTorch initializes them to zeros/ones).
    P = {
        'n1w': rnd(ks[0], (C,)) + 1.0, 'n1b': rnd(ks[1], (C,)),
        'w1': rnd(ks[2], (c2, C)),     'b1': rnd(ks[3], (c2,)),
        'w2': rnd(ks[4], (c2, 3, 3)),  'b2': rnd(ks[5], (c2,)),      # depthwise
        'wsca': rnd(ks[6], (c2 // 2, c2 // 2)), 'bsca': rnd(ks[7], (c2 // 2,)),
        'w3': rnd(ks[8], (C, c2 // 2)), 'b3': rnd(ks[9], (C,)),
        'w4': rnd(ks[10], (cf, C)),    'b4': rnd(ks[11], (cf,)),
        'w5': rnd(ks[12], (C, cf // 2)), 'b5': rnd(ks[13], (C,)),
        'n2w': rnd(ks[14], (C,)) + 1.0, 'n2b': rnd(ks[15], (C,)),
        'beta': rnd(ks[16], (1, C, 1, 1)),
        'gamma': rnd(ks[17], (1, C, 1, 1)),
    }

    inp = jax.random.normal(ks[18], (N, C, H, W), dtype=jnp.float32)

    out = nafblock_pallas(inp, P)
    out = jax.block_until_ready(out)

    ref = jax.block_until_ready(ref_nafblock(inp, P))
    assert out.shape == (N, C, H, W)
    assert jnp.allclose(out, ref, rtol=1e-4, atol=1e-4), (
        float(jnp.max(jnp.abs(out - ref))))

    print("KERNEL_OK")
</pallas_src>

<mosaic_0001>
module attributes {stable_mosaic.version = 11 : i64} {
  func.func @_nafblock_kernel(%arg0: i32, %arg1: memref<1x4x256xf32, #tpu.memory_space<vmem>>, %arg2: memref<7x4x4xf32, #tpu.memory_space<vmem>>, %arg3: memref<4x9xf32, #tpu.memory_space<vmem>>, %arg4: memref<4x9xf32, #tpu.memory_space<vmem>>, %arg5: memref<4x15xf32, #tpu.memory_space<vmem>>, %arg6: memref<9x256xf32, #tpu.memory_space<vmem>>, %arg7: memref<1x4x256xf32, #tpu.memory_space<vmem>>) attributes {dimension_semantics = [#tpu.dimension_semantics<parallel>], iteration_bounds = array<i64: 2>, scalar_prefetch = 0 : i64, scratch_operands = 0 : i64, tpu.core_type = #tpu.core_type<tc>, window_params = [{transform_indices = @transform_0, window_bounds = array<i64: 1, 4, 256>}, {pipeline_mode = #tpu.pipeline_mode<synchronous>, transform_indices = @transform_1, window_bounds = array<i64: 7, 4, 4>}, {pipeline_mode = #tpu.pipeline_mode<synchronous>, transform_indices = @transform_2, window_bounds = array<i64: 4, 9>}, {pipeline_mode = #tpu.pipeline_mode<synchronous>, transform_indices = @transform_3, window_bounds = array<i64: 4, 9>}, {pipeline_mode = #tpu.pipeline_mode<synchronous>, transform_indices = @transform_4, window_bounds = array<i64: 4, 15>}, {pipeline_mode = #tpu.pipeline_mode<synchronous>, transform_indices = @transform_5, window_bounds = array<i64: 9, 256>}, {transform_indices = @transform_6, window_bounds = array<i64: 1, 4, 256>}]} {
    %c0 = arith.constant 0 : index
    %c0_0 = arith.constant 0 : index
    %c0_1 = arith.constant 0 : index
    %0 = vector.load %arg1[%c0, %c0_0, %c0_1] : memref<1x4x256xf32, #tpu.memory_space<vmem>>, vector<1x4x256xf32>
    %1 = vector.shape_cast %0 : vector<1x4x256xf32> to vector<4x256xf32>
    %c0_2 = arith.constant 0 : index
    %c0_3 = arith.constant 0 : index
    %2 = vector.load %arg5[%c0_2, %c0_3] : memref<4x15xf32, #tpu.memory_space<vmem>>, vector<4x15xf32>
    %c0_4 = arith.constant 0 : index
    %c0_5 = arith.constant 0 : index
    %3 = vector.load %arg3[%c0_4, %c0_5] : memref<4x9xf32, #tpu.memory_space<vmem>>, vector<4x9xf32>
    %c0_6 = arith.constant 0 : index
    %c0_7 = arith.constant 0 : index
    %4 = vector.load %arg4[%c0_6, %c0_7] : memref<4x9xf32, #tpu.memory_space<vmem>>, vector<4x9xf32>
    %c0_8 = arith.constant 0 : index
    %c0_9 = arith.constant 0 : index
    %5 = vector.load %arg6[%c0_8, %c0_9] : memref<9x256xf32, #tpu.memory_space<vmem>>, vector<9x256xf32>
    %cst = arith.constant dense<0.000000e+00> : vector<256xf32>
    %6 = vector.multi_reduction <add>, %1, %cst [0] : vector<4x256xf32> to vector<256xf32>
    %7 = vector.shape_cast %6 : vector<256xf32> to vector<1x256xf32>
    %cst_10 = arith.constant 4.000000e+00 : f32
    %8 = vector.broadcast %cst_10 : f32 to vector<1x256xf32>
    %9 = arith.divf %7, %8 : vector<1x256xf32>
    %10 = vector.broadcast %9 : vector<1x256xf32> to vector<4x256xf32>
    %11 = arith.subf %1, %10 : vector<4x256xf32>
    %12 = vector.broadcast %9 : vector<1x256xf32> to vector<4x256xf32>
    %13 = arith.subf %1, %12 : vector<4x256xf32>
    %14 = arith.mulf %11, %13 : vector<4x256xf32>
    %cst_11 = arith.constant dense<0.000000e+00> : vector<256xf32>
    %15 = vector.multi_reduction <add>, %14, %cst_11 [0] : vector<4x256xf32> to vector<256xf32>
    %16 = vector.shape_cast %15 : vector<256xf32> to vector<1x256xf32>
    %cst_12 = arith.constant 4.000000e+00 : f32
    %17 = vector.broadcast %cst_12 : f32 to vector<1x256xf32>
    %18 = arith.divf %16, %17 : vector<1x256xf32>
    %19 = vector.broadcast %9 : vector<1x256xf32> to vector<4x256xf32>
    %20 = arith.subf %1, %19 : vector<4x256xf32>
    %cst_13 = arith.constant 9.99999997E-7 : f32
    %21 = vector.broadcast %cst_13 : f32 to vector<1x256xf32>
    %22 = arith.addf %18, %21 : vector<1x256xf32>
    %23 = math.rsqrt %22 : vector<1x256xf32>
    %24 = vector.broadcast %23 : vector<1x256xf32> to vector<4x256xf32>
    %25 = arith.mulf %20, %24 : vector<4x256xf32>
    %26 = vector.extract_strided_slice %2 {offsets = [0, 0], sizes = [4, 1], strides = [1, 1]} : vector<4x15xf32> to vector<4x1xf32>
    %27 = vector.broadcast %26 : vector<4x1xf32> to vector<4x256xf32>
    %28 = arith.mulf %25, %27 : vector<4x256xf32>
    %29 = vector.extract_strided_slice %2 {offsets = [0, 1], sizes = [4, 1], strides = [1, 1]} : vector<4x15xf32> to vector<4x1xf32>
    %30 = vector.broadcast %29 : vector<4x1xf32> to vector<4x256xf32>
    %31 = arith.addf %28, %30 : vector<4x256xf32>
    %c0_14 = arith.constant 0 : index
    %c0_15 = arith.constant 0 : index
    %c0_16 = arith.constant 0 : index
    %32 = vector.load %arg2[%c0_14, %c0_15, %c0_16] : memref<7x4x4xf32, #tpu.memory_space<vmem>>, vector<1x4x4xf32>
    %33 = vector.shape_cast %32 : vector<1x4x4xf32> to vector<4x4xf32>
    %cst_17 = arith.constant dense<0.000000e+00> : vector<4x256xf32>
    %34 = tpu.matmul %33, %31, %cst_17 {dimension_numbers = #tpu.dot_dimension_numbers<[1], [0], [0], [1], [0, 0, 1, 1], [], []>} : vector<4x4xf32>, vector<4x256xf32>, vector<4x256xf32> -> vector<4x256xf32>
    %35 = vector.extract_strided_slice %2 {offsets = [0, 2], sizes = [4, 1], strides = [1, 1]} : vector<4x15xf32> to vector<4x1xf32>
    %36 = vector.broadcast %35 : vector<4x1xf32> to vector<4x256xf32>
    %37 = arith.addf %34, %36 : vector<4x256xf32>
    %38 = vector.extract_strided_slice %3 {offsets = [0, 4], sizes = [4, 1], strides = [1, 1]} : vector<4x9xf32> to vector<4x1xf32>
    %39 = vector.broadcast %38 : vector<4x1xf32> to vector<4x256xf32>
    %40 = arith.mulf %37, %39 : vector<4x256xf32>
    %c17_i32 = arith.constant 17 : i32
    %41 = tpu.dynamic_rotate %37 by %c17_i32 dim 1 : vector<4x256xf32>, i32 -> vector<4x256xf32>
    %42 = vector.extract_strided_slice %5 {offsets = [0, 0], sizes = [1, 256], strides = [1, 1]} : vector<9x256xf32> to vector<1x256xf32>
    %43 = vector.broadcast %42 : vector<1x256xf32> to vector<4x256xf32>
    %44 = arith.mulf %41, %43 : vector<4x256xf32>
    %45 = vector.extract_strided_slice %3 {offsets = [0, 0], sizes = [4, 1], strides = [1, 1]} : vector<4x9xf32> to vector<4x1xf32>
    %46 = vector.broadcast %45 : vector<4x1xf32> to vector<4x256xf32>
    %47 = arith.mulf %44, %46 : vector<4x256xf32>
    %48 = arith.addf %40, %47 : vector<4x256xf32>
    %c16_i32 = arith.constant 16 : i32
    %49 = tpu.dynamic_rotate %37 by %c16_i32 dim 1 : vector<4x256xf32>, i32 -> vector<4x256xf32>
    %50 = vector.extract_strided_slice %5 {offsets = [1, 0], sizes = [1, 256], strides = [1, 1]} : vector<9x256xf32> to vector<1x256xf32>
    %51 = vector.broadcast %50 : vector<1x256xf32> to vector<4x256xf32>
    %52 = arith.mulf %49, %51 : vector<4x256xf32>
    %53 = vector.extract_strided_slice %3 {offsets = [0, 1], sizes = [4, 1], strides = [1, 1]} : vector<4x9xf32> to vector<4x1xf32>
    %54 = vector.broadcast %53 : vector<4x1xf32> to vector<4x256xf32>
    %55 = arith.mulf %52, %54 : vector<4x256xf32>
    %56 = arith.addf %48, %55 : vector<4x256xf32>
    %c15_i32 = arith.constant 15 : i32
    %57 = tpu.dynamic_rotate %37 by %c15_i32 dim 1 : vector<4x256xf32>, i32 -> vector<4x256xf32>
    %58 = vector.extract_strided_slice %5 {offsets = [2, 0], sizes = [1, 256], strides = [1, 1]} : vector<9x256xf32> to vector<1x256xf32>
    %59 = vector.broadcast %58 : vector<1x256xf32> to vector<4x256xf32>
    %60 = arith.mulf %57, %59 : vector<4x256xf32>
    %61 = vector.extract_strided_slice %3 {offsets = [0, 2], sizes = [4, 1], strides = [1, 1]} : vector<4x9xf32> to vector<4x1xf32>
    %62 = vector.broadcast %61 : vector<4x1xf32> to vector<4x256xf32>
    %63 = arith.mulf %60, %62 : vector<4x256xf32>
    %64 = arith.addf %56, %63 : vector<4x256xf32>
    %c1_i32 = arith.constant 1 : i32
    %65 = tpu.dynamic_rotate %37 by %c1_i32 dim 1 : vector<4x256xf32>, i32 -> vector<4x256xf32>
    %66 = vector.extract_strided_slice %5 {offsets = [3, 0], sizes = [1, 256], strides = [1, 1]} : vector<9x256xf32> to vector<1x256xf32>
    %67 = vector.broadcast %66 : vector<1x256xf32> to vector<4x256xf32>
    %68 = arith.mulf %65, %67 : vector<4x256xf32>
    %69 = vector.extract_strided_slice %3 {offsets = [0, 3], sizes = [4, 1], strides = [1, 1]} : vector<4x9xf32> to vector<4x1xf32>
    %70 = vector.broadcast %69 : vector<4x1xf32> to vector<4x256xf32>
    %71 = arith.mulf %68, %70 : vector<4x256xf32>
    %72 = arith.addf %64, %71 : vector<4x256xf32>
    %c255_i32 = arith.constant 255 : i32
    %73 = tpu.dynamic_rotate %37 by %c255_i32 dim 1 : vector<4x256xf32>, i32 -> vector<4x256xf32>
    %74 = vector.extract_strided_slice %5 {offsets = [5, 0], sizes = [1, 256], strides = [1, 1]} : vector<9x256xf32> to vector<1x256xf32>
    %75 = vector.broadcast %74 : vector<1x256xf32> to vector<4x256xf32>
    %76 = arith.mulf %73, %75 : vector<4x256xf32>
    %77 = vector.extract_strided_slice %3 {offsets = [0, 5], sizes = [4, 1], strides = [1, 1]} : vector<4x9xf32> to vector<4x1xf32>
    %78 = vector.broadcast %77 : vector<4x1xf32> to vector<4x256xf32>
    %79 = arith.mulf %76, %78 : vector<4x256xf32>
    %80 = arith.addf %72, %79 : vector<4x256xf32>
    %c241_i32 = arith.constant 241 : i32
    %81 = tpu.dynamic_rotate %37 by %c241_i32 dim 1 : vector<4x256xf32>, i32 -> vector<4x256xf32>
    %82 = vector.extract_strided_slice %5 {offsets = [6, 0], sizes = [1, 256], strides = [1, 1]} : vector<9x256xf32> to vector<1x256xf32>
    %83 = vector.broadcast %82 : vector<1x256xf32> to vector<4x256xf32>
    %84 = arith.mulf %81, %83 : vector<4x256xf32>
    %85 = vector.extract_strided_slice %3 {offsets = [0, 6], sizes = [4, 1], strides = [1, 1]} : vector<4x9xf32> to vector<4x1xf32>
    %86 = vector.broadcast %85 : vector<4x1xf32> to vector<4x256xf32>
    %87 = arith.mulf %84, %86 : vector<4x256xf32>
    %88 = arith.addf %80, %87 : vector<4x256xf32>
    %c240_i32 = arith.constant 240 : i32
    %89 = tpu.dynamic_rotate %37 by %c240_i32 dim 1 : vector<4x256xf32>, i32 -> vector<4x256xf32>
    %90 = vector.extract_strided_slice %5 {offsets = [7, 0], sizes = [1, 256], strides = [1, 1]} : vector<9x256xf32> to vector<1x256xf32>
    %91 = vector.broadcast %90 : vector<1x256xf32> to vector<4x256xf32>
    %92 = arith.mulf %89, %91 : vector<4x256xf32>
    %93 = vector.extract_strided_slice %3 {offsets = [0, 7], sizes = [4, 1], strides = [1, 1]} : vector<4x9xf32> to vector<4x1xf32>
    %94 = vector.broadcast %93 : vector<4x1xf32> to vector<4x256xf32>
    %95 = arith.mulf %92, %94 : vector<4x256xf32>
    %96 = arith.addf %88, %95 : vector<4x256xf32>
    %c239_i32 = arith.constant 239 : i32
    %97 = tpu.dynamic_rotate %37 by %c239_i32 dim 1 : vector<4x256xf32>, i32 -> vector<4x256xf32>
    %98 = vector.extract_strided_slice %5 {offsets = [8, 0], sizes = [1, 256], strides = [1, 1]} : vector<9x256xf32> to vector<1x256xf32>
    %99 = vector.broadcast %98 : vector<1x256xf32> to vector<4x256xf32>
    %100 = arith.mulf %97, %99 : vector<4x256xf32>
    %101 = vector.extract_strided_slice %3 {offsets = [0, 8], sizes = [4, 1], strides = [1, 1]} : vector<4x9xf32> to vector<4x1xf32>
    %102 = vector.broadcast %101 : vector<4x1xf32> to vector<4x256xf32>
    %103 = arith.mulf %100, %102 : vector<4x256xf32>
    %104 = arith.addf %96, %103 : vector<4x256xf32>
    %105 = vector.extract_strided_slice %2 {offsets = [0, 4], sizes = [4, 1], strides = [1, 1]} : vector<4x15xf32> to vector<4x1xf32>
    %106 = vector.broadcast %105 : vector<4x1xf32> to vector<4x256xf32>
    %107 = arith.addf %104, %106 : vector<4x256xf32>
    %c1 = arith.constant 1 : index
    %c0_18 = arith.constant 0 : index
    %c0_19 = arith.constant 0 : index
    %108 = vector.load %arg2[%c1, %c0_18, %c0_19] : memref<7x4x4xf32, #tpu.memory_space<vmem>>, vector<1x4x4xf32>
    %109 = vector.shape_cast %108 : vector<1x4x4xf32> to vector<4x4xf32>
    %cst_20 = arith.constant dense<0.000000e+00> : vector<4x256xf32>
    %110 = tpu.matmul %109, %31, %cst_20 {dimension_numbers = #tpu.dot_dimension_numbers<[1], [0], [0], [1], [0, 0, 1, 1], [], []>} : vector<4x4xf32>, vector<4x256xf32>, vector<4x256xf32> -> vector<4x256xf32>
    %111 = vector.extract_strided_slice %2 {offsets = [0, 3], sizes = [4, 1], strides = [1, 1]} : vector<4x15xf32> to vector<4x1xf32>
    %112 = vector.broadcast %111 : vector<4x1xf32> to vector<4x256xf32>
    %113 = arith.addf %110, %112 : vector<4x256xf32>
    %114 = vector.extract_strided_slice %4 {offsets = [0, 4], sizes = [4, 1], strides = [1, 1]} : vector<4x9xf32> to vector<4x1xf32>
    %115 = vector.broadcast %114 : vector<4x1xf32> to vector<4x256xf32>
    %116 = arith.mulf %113, %115 : vector<4x256xf32>
    %c17_i32_21 = arith.constant 17 : i32
    %117 = tpu.dynamic_rotate %113 by %c17_i32_21 dim 1 : vector<4x256xf32>, i32 -> vector<4x256xf32>
    %118 = vector.extract_strided_slice %5 {offsets = [0, 0], sizes = [1, 256], strides = [1, 1]} : vector<9x256xf32> to vector<1x256xf32>
    %119 = vector.broadcast %118 : vector<1x256xf32> to vector<4x256xf32>
    %120 = arith.mulf %117, %119 : vector<4x256xf32>
    %121 = vector.extract_strided_slice %4 {offsets = [0, 0], sizes = [4, 1], strides = [1, 1]} : vector<4x9xf32> to vector<4x1xf32>
    %122 = vector.broadcast %121 : vector<4x1xf32> to vector<4x256xf32>
    %123 = arith.mulf %120, %122 : vector<4x256xf32>
    %124 = arith.addf %116, %123 : vector<4x256xf32>
    %c16_i32_22 = arith.constant 16 : i32
    %125 = tpu.dynamic_rotate %113 by %c16_i32_22 dim 1 : vector<4x256xf32>, i32 -> vector<4x256xf32>
    %126 = vector.extract_strided_slice %5 {offsets = [1, 0], sizes = [1, 256], strides = [1, 1]} : vector<9x256xf32> to vector<1x256xf32>
    %127 = vector.broadcast %126 : vector<1x256xf32> to vector<4x256xf32>
    %128 = arith.mulf %125, %127 : vector<4x256xf32>
    %129 = vector.extract_strided_slice %4 {offsets = [0, 1], sizes = [4, 1], strides = [1, 1]} : vector<4x9xf32> to vector<4x1xf32>
    %130 = vector.broadcast %129 : vector<4x1xf32> to vector<4x256xf32>
    %131 = arith.mulf %128, %130 : vector<4x256xf32>
    %132 = arith.addf %124, %131 : vector<4x256xf32>
    %c15_i32_23 = arith.constant 15 : i32
    %133 = tpu.dynamic_rotate %113 by %c15_i32_23 dim 1 : vector<4x256xf32>, i32 -> vector<4x256xf32>
    %134 = vector.extract_strided_slice %5 {offsets = [2, 0], sizes = [1, 256], strides = [1, 1]} : vector<9x256xf32> to vector<1x256xf32>
    %135 = vector.broadcast %134 : vector<1x256xf32> to vector<4x256xf32>
    %136 = arith.mulf %133, %135 : vector<4x256xf32>
    %137 = vector.extract_strided_slice %4 {offsets = [0, 2], sizes = [4, 1], strides = [1, 1]} : vector<4x9xf32> to vector<4x1xf32>
    %138 = vector.broadcast %137 : vector<4x1xf32> to vector<4x256xf32>
    %139 = arith.mulf %136, %138 : vector<4x256xf32>
    %140 = arith.addf %132, %139 : vector<4x256xf32>
    %c1_i32_24 = arith.constant 1 : i32
    %141 = tpu.dynamic_rotate %113 by %c1_i32_24 dim 1 : vector<4x256xf32>, i32 -> vector<4x256xf32>
    %142 = vector.extract_strided_slice %5 {offsets = [3, 0], sizes = [1, 256], strides = [1, 1]} : vector<9x256xf32> to vector<1x256xf32>
    %143 = vector.broadcast %142 : vector<1x256xf32> to vector<4x256xf32>
    %144 = arith.mulf %141, %143 : vector<4x256xf32>
    %145 = vector.extract_strided_slice %4 {offsets = [0, 3], sizes = [4, 1], strides = [1, 1]} : vector<4x9xf32> to vector<4x1xf32>
    %146 = vector.broadcast %145 : vector<4x1xf32> to vector<4x256xf32>
    %147 = arith.mulf %144, %146 : vector<4x256xf32>
    %148 = arith.addf %140, %147 : vector<4x256xf32>
    %c255_i32_25 = arith.constant 255 : i32
    %149 = tpu.dynamic_rotate %113 by %c255_i32_25 dim 1 : vector<4x256xf32>, i32 -> vector<4x256xf32>
    %150 = vector.extract_strided_slice %5 {offsets = [5, 0], sizes = [1, 256], strides = [1, 1]} : vector<9x256xf32> to vector<1x256xf32>
    %151 = vector.broadcast %150 : vector<1x256xf32> to vector<4x256xf32>
    %152 = arith.mulf %149, %151 : vector<4x256xf32>
    %153 = vector.extract_strided_slice %4 {offsets = [0, 5], sizes = [4, 1], strides = [1, 1]} : vector<4x9xf32> to vector<4x1xf32>
    %154 = vector.broadcast %153 : vector<4x1xf32> to vector<4x256xf32>
    %155 = arith.mulf %152, %154 : vector<4x256xf32>
    %156 = arith.addf %148, %155 : vector<4x256xf32>
    %c241_i32_26 = arith.constant 241 : i32
    %157 = tpu.dynamic_rotate %113 by %c241_i32_26 dim 1 : vector<4x256xf32>, i32 -> vector<4x256xf32>
    %158 = vector.extract_strided_slice %5 {offsets = [6, 0], sizes = [1, 256], strides = [1, 1]} : vector<9x256xf32> to vector<1x256xf32>
    %159 = vector.broadcast %158 : vector<1x256xf32> to vector<4x256xf32>
    %160 = arith.mulf %157, %159 : vector<4x256xf32>
    %161 = vector.extract_strided_slice %4 {offsets = [0, 6], sizes = [4, 1], strides = [1, 1]} : vector<4x9xf32> to vector<4x1xf32>
    %162 = vector.broadcast %161 : vector<4x1xf32> to vector<4x256xf32>
    %163 = arith.mulf %160, %162 : vector<4x256xf32>
    %164 = arith.addf %156, %163 : vector<4x256xf32>
    %c240_i32_27 = arith.constant 240 : i32
    %165 = tpu.dynamic_rotate %113 by %c240_i32_27 dim 1 : vector<4x256xf32>, i32 -> vector<4x256xf32>
    %166 = vector.extract_strided_slice %5 {offsets = [7, 0], sizes = [1, 256], strides = [1, 1]} : vector<9x256xf32> to vector<1x256xf32>
    %167 = vector.broadcast %166 : vector<1x256xf32> to vector<4x256xf32>
    %168 = arith.mulf %165, %167 : vector<4x256xf32>
    %169 = vector.extract_strided_slice %4 {offsets = [0, 7], sizes = [4, 1], strides = [1, 1]} : vector<4x9xf32> to vector<4x1xf32>
    %170 = vector.broadcast %169 : vector<4x1xf32> to vector<4x256xf32>
    %171 = arith.mulf %168, %170 : vector<4x256xf32>
    %172 = arith.addf %164, %171 : vector<4x256xf32>
    %c239_i32_28 = arith.constant 239 : i32
    %173 = tpu.dynamic_rotate %113 by %c239_i32_28 dim 1 : vector<4x256xf32>, i32 -> vector<4x256xf32>
    %174 = vector.extract_strided_slice %5 {offsets = [8, 0], sizes = [1, 256], strides = [1, 1]} : vector<9x256xf32> to vector<1x256xf32>
    %175 = vector.broadcast %174 : vector<1x256xf32> to vector<4x256xf32>
    %176 = arith.mulf %173, %175 : vector<4x256xf32>
    %177 = vector.extract_strided_slice %4 {offsets = [0, 8], sizes = [4, 1], strides = [1, 1]} : vector<4x9xf32> to vector<4x1xf32>
    %178 = vector.broadcast %177 : vector<4x1xf32> to vector<4x256xf32>
    %179 = arith.mulf %176, %178 : vector<4x256xf32>
    %180 = arith.addf %172, %179 : vector<4x256xf32>
    %181 = vector.extract_strided_slice %2 {offsets = [0, 5], sizes = [4, 1], strides = [1, 1]} : vector<4x15xf32> to vector<4x1xf32>
    %182 = vector.broadcast %181 : vector<4x1xf32> to vector<4x256xf32>
    %183 = arith.addf %180, %182 : vector<4x256xf32>
    %184 = arith.mulf %107, %183 : vector<4x256xf32>
    %cst_29 = arith.constant dense<0.000000e+00> : vector<4xf32>
    %185 = vector.multi_reduction <add>, %184, %cst_29 [1] : vector<4x256xf32> to vector<4xf32>
    %186 = vector.shape_cast %185 : vector<4xf32> to vector<4x1xf32>
    %cst_30 = arith.constant 2.560000e+02 : f32
    %187 = vector.broadcast %cst_30 : f32 to vector<4x1xf32>
    %188 = arith.divf %186, %187 : vector<4x1xf32>
    %c2 = arith.constant 2 : index
    %c0_31 = arith.constant 0 : index
    %c0_32 = arith.constant 0 : index
    %189 = vector.load %arg2[%c2, %c0_31, %c0_32] : memref<7x4x4xf32, #tpu.memory_space<vmem>>, vector<1x4x4xf32>
    %190 = vector.shape_cast %189 : vector<1x4x4xf32> to vector<4x4xf32>
    %cst_33 = arith.constant dense<0.000000e+00> : vector<4x1xf32>
    %191 = tpu.matmul %190, %188, %cst_33 {dimension_numbers = #tpu.dot_dimension_numbers<[1], [0], [0], [1], [0, 0, 1, 1], [], []>} : vector<4x4xf32>, vector<4x1xf32>, vector<4x1xf32> -> vector<4x1xf32>
    %192 = vector.extract_strided_slice %2 {offsets = [0, 6], sizes = [4, 1], strides = [1, 1]} : vector<4x15xf32> to vector<4x1xf32>
    %193 = arith.addf %191, %192 : vector<4x1xf32>
    %194 = vector.broadcast %193 : vector<4x1xf32> to vector<4x256xf32>
    %195 = arith.mulf %184, %194 : vector<4x256xf32>
    %c3 = arith.constant 3 : index
    %c0_34 = arith.constant 0 : index
    %c0_35 = arith.constant 0 : index
    %196 = vector.load %arg2[%c3, %c0_34, %c0_35] : memref<7x4x4xf32, #tpu.memory_space<vmem>>, vector<1x4x4xf32>
    %197 = vector.shape_cast %196 : vector<1x4x4xf32> to vector<4x4xf32>
    %cst_36 = arith.constant dense<0.000000e+00> : vector<4x256xf32>
    %198 = tpu.matmul %197, %195, %cst_36 {dimension_numbers = #tpu.dot_dimension_numbers<[1], [0], [0], [1], [0, 0, 1, 1], [], []>} : vector<4x4xf32>, vector<4x256xf32>, vector<4x256xf32> -> vector<4x256xf32>
    %199 = vector.extract_strided_slice %2 {offsets = [0, 7], sizes = [4, 1], strides = [1, 1]} : vector<4x15xf32> to vector<4x1xf32>
    %200 = vector.broadcast %199 : vector<4x1xf32> to vector<4x256xf32>
    %201 = arith.addf %198, %200 : vector<4x256xf32>
    %202 = vector.extract_strided_slice %2 {offsets = [0, 8], sizes = [4, 1], strides = [1, 1]} : vector<4x15xf32> to vector<4x1xf32>
    %203 = vector.broadcast %202 : vector<4x1xf32> to vector<4x256xf32>
    %204 = arith.mulf %201, %203 : vector<4x256xf32>
    %205 = arith.addf %1, %204 : vector<4x256xf32>
    %cst_37 = arith.constant dense<0.000000e+00> : vector<256xf32>
    %206 = vector.multi_reduction <add>, %205, %cst_37 [0] : vector<4x256xf32> to vector<256xf32>
    %207 = vector.shape_cast %206 : vector<256xf32> to vector<1x256xf32>
    %cst_38 = arith.constant 4.000000e+00 : f32
    %208 = vector.broadcast %cst_38 : f32 to vector<1x256xf32>
    %209 = arith.divf %207, %208 : vector<1x256xf32>
    %210 = vector.broadcast %209 : vector<1x256xf32> to vector<4x256xf32>
    %211 = arith.subf %205, %210 : vector<4x256xf32>
    %212 = vector.broadcast %209 : vector<1x256xf32> to vector<4x256xf32>
    %213 = arith.subf %205, %212 : vector<4x256xf32>
    %214 = arith.mulf %211, %213 : vector<4x256xf32>
    %cst_39 = arith.constant dense<0.000000e+00> : vector<256xf32>
    %215 = vector.multi_reduction <add>, %214, %cst_39 [0] : vector<4x256xf32> to vector<256xf32>
    %216 = vector.shape_cast %215 : vector<256xf32> to vector<1x256xf32>
    %cst_40 = arith.constant 4.000000e+00 : f32
    %217 = vector.broadcast %cst_40 : f32 to vector<1x256xf32>
    %218 = arith.divf %216, %217 : vector<1x256xf32>
    %219 = vector.broadcast %209 : vector<1x256xf32> to vector<4x256xf32>
    %220 = arith.subf %205, %219 : vector<4x256xf32>
    %cst_41 = arith.constant 9.99999997E-7 : f32
    %221 = vector.broadcast %cst_41 : f32 to vector<1x256xf32>
    %222 = arith.addf %218, %221 : vector<1x256xf32>
    %223 = math.rsqrt %222 : vector<1x256xf32>
    %224 = vector.broadcast %223 : vector<1x256xf32> to vector<4x256xf32>
    %225 = arith.mulf %220, %224 : vector<4x256xf32>
    %226 = vector.extract_strided_slice %2 {offsets = [0, 9], sizes = [4, 1], strides = [1, 1]} : vector<4x15xf32> to vector<4x1xf32>
    %227 = vector.broadcast %226 : vector<4x1xf32> to vector<4x256xf32>
    %228 = arith.mulf %225, %227 : vector<4x256xf32>
    %229 = vector.extract_strided_slice %2 {offsets = [0, 10], sizes = [4, 1], strides = [1, 1]} : vector<4x15xf32> to vector<4x1xf32>
    %230 = vector.broadcast %229 : vector<4x1xf32> to vector<4x256xf32>
    %231 = arith.addf %228, %230 : vector<4x256xf32>
    %c4 = arith.constant 4 : index
    %c0_42 = arith.constant 0 : index
    %c0_43 = arith.constant 0 : index
    %232 = vector.load %arg2[%c4, %c0_42, %c0_43] : memref<7x4x4xf32, #tpu.memory_space<vmem>>, vector<1x4x4xf32>
    %233 = vector.shape_cast %232 : vector<1x4x4xf32> to vector<4x4xf32>
    %cst_44 = arith.constant dense<0.000000e+00> : vector<4x256xf32>
    %234 = tpu.matmul %233, %231, %cst_44 {dimension_numbers = #tpu.dot_dimension_numbers<[1], [0], [0], [1], [0, 0, 1, 1], [], []>} : vector<4x4xf32>, vector<4x256xf32>, vector<4x256xf32> -> vector<4x256xf32>
    %235 = vector.extract_strided_slice %2 {offsets = [0, 11], sizes = [4, 1], strides = [1, 1]} : vector<4x15xf32> to vector<4x1xf32>
    %236 = vector.broadcast %235 : vector<4x1xf32> to vector<4x256xf32>
    %237 = arith.addf %234, %236 : vector<4x256xf32>
    %c5 = arith.constant 5 : index
    %c0_45 = arith.constant 0 : index
    %c0_46 = arith.constant 0 : index
    %238 = vector.load %arg2[%c5, %c0_45, %c0_46] : memref<7x4x4xf32, #tpu.memory_space<vmem>>, vector<1x4x4xf32>
    %239 = vector.shape_cast %238 : vector<1x4x4xf32> to vector<4x4xf32>
    %cst_47 = arith.constant dense<0.000000e+00> : vector<4x256xf32>
    %240 = tpu.matmul %239, %231, %cst_47 {dimension_numbers = #tpu.dot_dimension_numbers<[1], [0], [0], [1], [0, 0, 1, 1], [], []>} : vector<4x4xf32>, vector<4x256xf32>, vector<4x256xf32> -> vector<4x256xf32>
    %241 = vector.extract_strided_slice %2 {offsets = [0, 12], sizes = [4, 1], strides = [1, 1]} : vector<4x15xf32> to vector<4x1xf32>
    %242 = vector.broadcast %241 : vector<4x1xf32> to vector<4x256xf32>
    %243 = arith.addf %240, %242 : vector<4x256xf32>
    %244 = arith.mulf %237, %243 : vector<4x256xf32>
    %c6 = arith.constant 6 : index
    %c0_48 = arith.constant 0 : index
    %c0_49 = arith.constant 0 : index
    %245 = vector.load %arg2[%c6, %c0_48, %c0_49] : memref<7x4x4xf32, #tpu.memory_space<vmem>>, vector<1x4x4xf32>
    %246 = vector.shape_cast %245 : vector<1x4x4xf32> to vector<4x4xf32>
    %cst_50 = arith.constant dense<0.000000e+00> : vector<4x256xf32>
    %247 = tpu.matmul %246, %244, %cst_50 {dimension_numbers = #tpu.dot_dimension_numbers<[1], [0], [0], [1], [0, 0, 1, 1], [], []>} : vector<4x4xf32>, vector<4x256xf32>, vector<4x256xf32> -> vector<4x256xf32>
    %248 = vector.extract_strided_slice %2 {offsets = [0, 13], sizes = [4, 1], strides = [1, 1]} : vector<4x15xf32> to vector<4x1xf32>
    %249 = vector.broadcast %248 : vector<4x1xf32> to vector<4x256xf32>
    %250 = arith.addf %247, %249 : vector<4x256xf32>
    %251 = vector.extract_strided_slice %2 {offsets = [0, 14], sizes = [4, 1], strides = [1, 1]} : vector<4x15xf32> to vector<4x1xf32>
    %252 = vector.broadcast %251 : vector<4x1xf32> to vector<4x256xf32>
    %253 = arith.mulf %250, %252 : vector<4x256xf32>
    %254 = arith.addf %205, %253 : vector<4x256xf32>
    %c0_51 = arith.constant 0 : index
    %c0_52 = arith.constant 0 : index
    %c0_53 = arith.constant 0 : index
    %255 = vector.load %arg7[%c0_51, %c0_52, %c0_53] : memref<1x4x256xf32, #tpu.memory_space<vmem>>, vector<1x4x256xf32>
    %256 = vector.shape_cast %255 : vector<1x4x256xf32> to vector<4x256xf32>
    %257 = vector.shape_cast %254 : vector<4x256xf32> to vector<1x4x256xf32>
    tpu.vector_store %arg7[%c0_51, %c0_52, %c0_53], %257 {strides = array<i32>} : memref<1x4x256xf32, #tpu.memory_space<vmem>>, vector<1x4x256xf32>,
    return
  }
  func.func @transform_0(%arg0: i32) -> (i32, i32, i32) {
    %c0_i32 = arith.constant 0 : i32
    %c0_i32_0 = arith.constant 0 : i32
    %c0_i32_1 = arith.constant 0 : i32
    return %arg0, %c0_i32, %c0_i32_0 : i32, i32, i32
  }
  func.func @transform_1(%arg0: i32) -> (i32, i32, i32) {
    %c0_i32 = arith.constant 0 : i32
    %c0_i32_0 = arith.constant 0 : i32
    %c0_i32_1 = arith.constant 0 : i32
    %c0_i32_2 = arith.constant 0 : i32
    return %c0_i32, %c0_i32_0, %c0_i32_1 : i32, i32, i32
  }
  func.func @transform_2(%arg0: i32) -> (i32, i32) {
    %c0_i32 = arith.constant 0 : i32
    %c0_i32_0 = arith.constant 0 : i32
    %c0_i32_1 = arith.constant 0 : i32
    return %c0_i32, %c0_i32_0 : i32, i32
  }
  func.func @transform_3(%arg0: i32) -> (i32, i32) {
    %c0_i32 = arith.constant 0 : i32
    %c0_i32_0 = arith.constant 0 : i32
    %c0_i32_1 = arith.constant 0 : i32
    return %c0_i32, %c0_i32_0 : i32, i32
  }
  func.func @transform_4(%arg0: i32) -> (i32, i32) {
    %c0_i32 = arith.constant 0 : i32
    %c0_i32_0 = arith.constant 0 : i32
    %c0_i32_1 = arith.constant 0 : i32
    return %c0_i32, %c0_i32_0 : i32, i32
  }
  func.func @transform_5(%arg0: i32) -> (i32, i32) {
    %c0_i32 = arith.constant 0 : i32
    %c0_i32_0 = arith.constant 0 : i32
    %c0_i32_1 = arith.constant 0 : i32
    return %c0_i32, %c0_i32_0 : i32, i32
  }
  func.func @transform_6(%arg0: i32) -> (i32, i32, i32) {
    %c0_i32 = arith.constant 0 : i32
    %c0_i32_0 = arith.constant 0 : i32
    %c0_i32_1 = arith.constant 0 : i32
    return %arg0, %c0_i32, %c0_i32_0 : i32, i32, i32
  }
}

</mosaic_0001>

<llo_original>
// kernel: tpu_custom_call.1
$region0: #{tpu_custom_call.1}
  #allocation0 [shape = 'u32[]', space=smem, size = 0x4, offset = 0x4, fixed_abs, tag = 'smem constant byte address 0x4 - core index']
  #allocation1 [shape = 'u32[144,128]{1,0:T(1,128)}', space=vmem, size = 0x12000, scoped, tag = 'internal scratch']
  %s0 = inlined_call_operand.vmem [shape: f32[2,4,256], index: 0, kind: input, shape index: {}]
  %s1 = inlined_call_operand.vmem [shape: f32[7,4,4], index: 1, kind: input, shape index: {}]
  %s2 = inlined_call_operand.vmem [shape: f32[4,9], index: 2, kind: input, shape index: {}]
  %s3 = inlined_call_operand.hbm [shape: f32[4,9], index: 3, kind: input, shape index: {}]
  %s4 = inlined_call_operand.hbm [shape: f32[4,15], index: 4, kind: input, shape index: {}]
  %s5 = inlined_call_operand.vmem [shape: f32[9,256], index: 5, kind: input, shape index: {}]
  %s6 = inlined_call_operand.hbm [shape: f32[2,4,256], index: 6, kind: output, shape index: {}]
  %s7 = sld [smem:[#allocation0]]
  $region65: #{tpu_custom_call.1} parent=0
    _
  %s9 = ssub.s32 1, %s7
  %s10 = scalar_select 0, %s9, %s7
  $region1: #{tpu_custom_call.1} parent=0
    #allocation2 [shape = 'u8[2048]{0}', space=vmem, size = 0x800, scoped, tag = 'input window, operand 3, single buffered']
    #allocation3 [shape = 's32[2]{0}', space=sflag, size = 0x8, scoped, tag = 'scoped memory for tpu_custom_call.1']
    #allocation4 [shape = 's32[2]{0}', space=sflag, size = 0x8, scoped, tag = 'scoped memory for tpu_custom_call.1']
    #allocation5 [shape = 'u8[2048]{0}', space=vmem, size = 0x800, scoped, tag = 'input window, operand 4, single buffered']
    #allocation6 [shape = 's32[1]{0}', space=sflag, size = 0x4, scoped, tag = 'scoped memory for tpu_custom_call.1']
    #allocation7 [shape = 'u8[8192]{0}', space=vmem, size = 0x2000, scoped, tag = 'output window, operand 0']
    %11 = vsyncpa [#allocation3], 0
    %12 = vsyncpa [#allocation6], 0
    %13 = vsyncpa [#allocation4], 0
    %s14 = scalar_lea.sflag [#allocation4], 1
    %15 = vsyncpa %s14, 0
    loop: start=0, step=1, limit=4
    $region2: #{tpu_custom_call.1} parent=1 // loop_pre_header
      _
    $region3: #{tpu_custom_call.1} parent=1 // loop_header
      %s17 = sphi 0, %s21
      %p18 = scmp.ge.s32.totalorder %s17, 4
      %s27 = sphi 0, %s29
      %s30 = sphi 0, %s27
      %s31 = sphi 0, %s30
      %s47 = sphi 0, %s31
      %s51 = sphi 0, %s51
      %s53 = sphi 0, %s51
      %s54 = sphi 0, %s53
      %s68 = sphi 0, %s54
      %s72 = sphi 0, %s72
      %s74 = sphi 0, %s72
      %s75 = sphi 0, %s74
      %s89 = sphi 0, %s75
      %s93 = sphi 0, %s93
      %s95 = sphi 0, %s93
      %s96 = sphi 0, %s95
      %s110 = sphi 0, %s96
      %s114 = sphi 0, %s114
      %s116 = sphi 0, %s114
      %s117 = sphi 0, %s116
      %s131 = sphi 0, %s117
      %s135 = sphi 0, %s135
      %s137 = sphi 0, %s135
      %s138 = sphi 0, %s137
      %s152 = sphi 0, %s138
      %s158 = sphi 0, %s160
      %s161 = sphi 0, %s158
      %s162 = sphi 0, %s161
      %s178 = sphi 0, %s162
    $region4: #{tpu_custom_call.1} parent=1 // loop_header_branch
      %20 = sbr.rel (%p18) target = $region8
    $region5: #{tpu_custom_call.1} parent=1 // loop_body
      %s22 = ssub.s32 %s17, 1
      %s23 = ssub.s32 %s17, 2
      %s24 = sadd.s32 %s17, 1
      %s25 = ssub.s32 %s17, %s24
      %p26 = scmp.eq.s32.totalorder %s25, 0
      %s28 = sadd.s32 %s27, 1
      %s29 = scalar_select %p26, %s27, %s28
      %p32 = pneg %p26
      %p33 = scmp.eq.s32.totalorder %s17, 1
      %p34 = por %p32, %p33
      %p35 = scmp.ne.s32.totalorder %s27, %s30
      %p36 = scmp.eq.s32.totalorder %s17, 0
      %p37 = por %p35, %p36
      %p38 = scmp.ne.s32.totalorder %s27, %s30
      %p39 = scmp.eq.s32.totalorder %s22, 1
      %p40 = por %p38, %p39
      %p41 = scmp.ne.s32.totalorder %s30, %s31
      %p42 = scmp.eq.s32.totalorder %s22, 0
      %p43 = por %p41, %p42
      %p44 = scmp.ne.s32.totalorder %s30, %s31
      %p45 = scmp.eq.s32.totalorder %s23, 1
      %p46 = por %p44, %p45
      %p48 = scmp.ne.s32.totalorder %s31, %s47
      %p49 = scmp.eq.s32.totalorder %s23, 0
      %p50 = por %p48, %p49
      %s52 = sadd.s32 %s51, 1
      %p55 = scmp.eq.s32.totalorder %s17, 1
      %p56 = scmp.ne.s32.totalorder %s51, %s53
      %p57 = scmp.eq.s32.totalorder %s17, 0
      %p58 = por %p56, %p57
      %p59 = scmp.ne.s32.totalorder %s51, %s53
      %p60 = scmp.eq.s32.totalorder %s22, 1
      %p61 = por %p59, %p60
      %p62 = scmp.ne.s32.totalorder %s53, %s54
      %p63 = scmp.eq.s32.totalorder %s22, 0
      %p64 = por %p62, %p63
      %p65 = scmp.ne.s32.totalorder %s53, %s54
      %p66 = scmp.eq.s32.totalorder %s23, 1
      %p67 = por %p65, %p66
      %p69 = scmp.ne.s32.totalorder %s54, %s68
      %p70 = scmp.eq.s32.totalorder %s23, 0
      %p71 = por %p69, %p70
      %s73 = sadd.s32 %s72, 1
      %p76 = scmp.eq.s32.totalorder %s17, 1
      %p77 = scmp.ne.s32.totalorder %s72, %s74
      %p78 = scmp.eq.s32.totalorder %s17, 0
      %p79 = por %p77, %p78
      %p80 = scmp.ne.s32.totalorder %s72, %s74
      %p81 = scmp.eq.s32.totalorder %s22, 1
      %p82 = por %p80, %p81
      %p83 = scmp.ne.s32.totalorder %s74, %s75
      %p84 = scmp.eq.s32.totalorder %s22, 0
      %p85 = por %p83, %p84
      %p86 = scmp.ne.s32.totalorder %s74, %s75
      %p87 = scmp.eq.s32.totalorder %s23, 1
      %p88 = por %p86, %p87
      %p90 = scmp.ne.s32.totalorder %s75, %s89
      %p91 = scmp.eq.s32.totalorder %s23, 0
      %p92 = por %p90, %p91
      %s94 = sadd.s32 %s93, 1
      %p97 = scmp.eq.s32.totalorder %s17, 1
      %p98 = scmp.ne.s32.totalorder %s93, %s95
      %p99 = scmp.eq.s32.totalorder %s17, 0
      %p100 = por %p98, %p99
      %p101 = scmp.ne.s32.totalorder %s93, %s95
      %p102 = scmp.eq.s32.totalorder %s22, 1
      %p103 = por %p101, %p102
      %p104 = scmp.ne.s32.totalorder %s95, %s96
      %p105 = scmp.eq.s32.totalorder %s22, 0
      %p106 = por %p104, %p105
      %p107 = scmp.ne.s32.totalorder %s95, %s96
      %p108 = scmp.eq.s32.totalorder %s23, 1
      %p109 = por %p107, %p108
      %p111 = scmp.ne.s32.totalorder %s96, %s110
      %p112 = scmp.eq.s32.totalorder %s23, 0
      %p113 = por %p111, %p112
      %s115 = sadd.s32 %s114, 1
      %p118 = scmp.eq.s32.totalorder %s17, 1
      %p119 = scmp.ne.s32.totalorder %s114, %s116
      %p120 = scmp.eq.s32.totalorder %s17, 0
      %p121 = por %p119, %p120
      %p122 = scmp.ne.s32.totalorder %s114, %s116
      %p123 = scmp.eq.s32.totalorder %s22, 1
      %p124 = por %p122, %p123
      %p125 = scmp.ne.s32.totalorder %s116, %s117
      %p126 = scmp.eq.s32.totalorder %s22, 0
      %p127 = por %p125, %p126
      %p128 = scmp.ne.s32.totalorder %s116, %s117
      %p129 = scmp.eq.s32.totalorder %s23, 1
      %p130 = por %p128, %p129
      %p132 = scmp.ne.s32.totalorder %s117, %s131
      %p133 = scmp.eq.s32.totalorder %s23, 0
      %p134 = por %p132, %p133
      %s136 = sadd.s32 %s135, 1
      %p139 = scmp.eq.s32.totalorder %s17, 1
      %p140 = scmp.ne.s32.totalorder %s135, %s137
      %p141 = scmp.eq.s32.totalorder %s17, 0
      %p142 = por %p140, %p141
      %p143 = scmp.ne.s32.totalorder %s135, %s137
      %p144 = scmp.eq.s32.totalorder %s22, 1
      %p145 = por %p143, %p144
      %p146 = scmp.ne.s32.totalorder %s137, %s138
      %p147 = scmp.eq.s32.totalorder %s22, 0
      %p148 = por %p146, %p147
      %p149 = scmp.ne.s32.totalorder %s137, %s138
      %p150 = scmp.eq.s32.totalorder %s23, 1
      %p151 = por %p149, %p150
      %p153 = scmp.ne.s32.totalorder %s138, %s152
      %p154 = scmp.eq.s32.totalorder %s23, 0
      %p155 = por %p153, %p154
      %s156 = ssub.s32 %s17, %s24
      %p157 = scmp.eq.s32.totalorder %s156, 0
      %s159 = sadd.s32 %s158, 1
      %s160 = scalar_select %p157, %s158, %s159
      %p163 = pneg %p157
      %p164 = scmp.eq.s32.totalorder %s17, 1
      %p165 = por %p163, %p164
      %p166 = scmp.ne.s32.totalorder %s158, %s161
      %p167 = scmp.eq.s32.totalorder %s17, 0
      %p168 = por %p166, %p167
      %p169 = scmp.ne.s32.totalorder %s158, %s161
      %p170 = scmp.eq.s32.totalorder %s22, 1
      %p171 = por %p169, %p170
      %p172 = scmp.ne.s32.totalorder %s161, %s162
      %p173 = scmp.eq.s32.totalorder %s22, 0
      %p174 = por %p172, %p173
      %p175 = scmp.ne.s32.totalorder %s161, %s162
      %p176 = scmp.eq.s32.totalorder %s23, 1
      %p177 = por %p175, %p176
      %p179 = scmp.ne.s32.totalorder %s162, %s178
      %p180 = scmp.eq.s32.totalorder %s23, 0
      %p181 = por %p179, %p180
      %p182 = scmp.le.s32.totalorder 1, %s17
      %p183 = scmp.lt.s32.totalorder %s17, 3
      %p184 = pnand %p182, %p183
      %p185 = pneg %p184
      // Predicated region
      $region9: #{tpu_custom_call.1} parent=5 // pred_check
        _
      $region10: #{tpu_custom_call.1} parent=5 // pred_check_branch
        %187 = sbr.rel (%p184) target = $region12
      $region11: #{tpu_custom_call.1} parent=5 // pred_region
        %s188 = ssub.s32 %s17, 1
        // Predicated region
        $region13: #{tpu_custom_call.1} parent=11 // pred_check
          %p189 = pneg %p64
        $region14: #{tpu_custom_call.1} parent=11 // pred_check_branch
          %191 = sbr.rel (%p189) target = $region16
        $region15: #{tpu_custom_call.1} parent=11 // pred_region
          _
        $region16: #{tpu_custom_call.1} parent=11 // pred_fallthru
          _
        // Predicated region
        $region17: #{tpu_custom_call.1} parent=11 // pred_check
          %p192 = pneg %p85
        $region18: #{tpu_custom_call.1} parent=11 // pred_check_branch
          %194 = sbr.rel (%p192) target = $region20
        $region19: #{tpu_custom_call.1} parent=11 // pred_region
          _
        $region20: #{tpu_custom_call.1} parent=11 // pred_fallthru
          _
        // Predicated region
        $region21: #{tpu_custom_call.1} parent=11 // pred_check
          %p195 = pneg %p106
        $region22: #{tpu_custom_call.1} parent=11 // pred_check_branch
          %197 = sbr.rel (%p195) target = $region24
        $region23: #{tpu_custom_call.1} parent=11 // pred_region
          %s199 = ssub.s32 64, 64
          %200 = vsyncadd [#allocation3], %s199
          %s202 = sshll.u32 [#allocation2], 4
          %s203 = int_to_ptr.vmem [resolvable:$true] %s202
          %205 = dma.hbm_to_vmem [thread:$0]  %s3, 64, %s203, [#allocation3]
        $region24: #{tpu_custom_call.1} parent=11 // pred_fallthru
          _
        // Predicated region
        $region25: #{tpu_custom_call.1} parent=11 // pred_check
          %p206 = pneg %p127
        $region26: #{tpu_custom_call.1} parent=11 // pred_check_branch
          %208 = sbr.rel (%p206) target = $region28
        $region27: #{tpu_custom_call.1} parent=11 // pred_region
          %s210 = ssub.s32 64, 64
          %211 = vsyncadd [#allocation6], %s210
          %s213 = sshll.u32 [#allocation5], 4
          %s214 = int_to_ptr.vmem [resolvable:$true] %s213
          %216 = dma.hbm_to_vmem [thread:$0]  %s4, 64, %s214, [#allocation6]
        $region28: #{tpu_custom_call.1} parent=11 // pred_fallthru
          _
        // Predicated region
        $region29: #{tpu_custom_call.1} parent=11 // pred_check
          %p217 = pneg %p148
        $region30: #{tpu_custom_call.1} parent=11 // pred_check_branch
          %219 = sbr.rel (%p217) target = $region32
        $region31: #{tpu_custom_call.1} parent=11 // pred_region
          _
        $region32: #{tpu_custom_call.1} parent=11 // pred_fallthru
          _
      $region12: #{tpu_custom_call.1} parent=5 // pred_fallthru
        _
      %p220 = scmp.lt.s32.totalorder %s17, 2
      // Predicated region
      $region33: #{tpu_custom_call.1} parent=5 // pred_check
        %p221 = pneg %p220
      $region34: #{tpu_custom_call.1} parent=5 // pred_check_branch
        %223 = sbr.rel (%p221) target = $region36
      $region35: #{tpu_custom_call.1} parent=5 // pred_region
        // Predicated region
        $region37: #{tpu_custom_call.1} parent=35 // pred_check
          %p224 = pneg %p37
        $region38: #{tpu_custom_call.1} parent=35 // pred_check_branch
          %226 = sbr.rel (%p224) target = $region40
        $region39: #{tpu_custom_call.1} parent=35 // pred_region
          %p227 = scmp.lt.s32.totalorder %s17, 1
          %s228 = scalar_select %p227, %s17, 1
          %s229 = smul.addr %s228, 2
          %s230 = smul.addr %s229, 4
          %s231 = scalar_lea.vmem %s0, %s230
        $region40: #{tpu_custom_call.1} parent=35 // pred_fallthru
          _
      $region36: #{tpu_custom_call.1} parent=5 // pred_fallthru
        _
      %p232 = scmp.le.s32.totalorder 1, %s17
      %p233 = scmp.lt.s32.totalorder %s17, 3
      %p234 = pnand %p232, %p233
      %p235 = pneg %p234
      // Predicated region
      $region41: #{tpu_custom_call.1} parent=5 // pred_check
        _
      $region42: #{tpu_custom_call.1} parent=5 // pred_check_branch
        %237 = sbr.rel (%p234) target = $region44
      $region43: #{tpu_custom_call.1} parent=5 // pred_region
        %s238 = ssub.s32 %s17, 1
        // Predicated region
        $region45: #{tpu_custom_call.1} parent=43 // pred_check
          %p239 = pneg %p106
        $region46: #{tpu_custom_call.1} parent=43 // pred_check_branch
          %241 = sbr.rel (%p239) target = $region48
        $region47: #{tpu_custom_call.1} parent=43 // pred_region
          %242 = dma.done [#allocation3], 64
        $region48: #{tpu_custom_call.1} parent=43 // pred_fallthru
          _
        // Predicated region
        $region49: #{tpu_custom_call.1} parent=43 // pred_check
          %p243 = pneg %p127
        $region50: #{tpu_custom_call.1} parent=43 // pred_check_branch
          %245 = sbr.rel (%p243) target = $region52
        $region51: #{tpu_custom_call.1} parent=43 // pred_region
          %246 = dma.done [#allocation6], 64
        $region52: #{tpu_custom_call.1} parent=43 // pred_fallthru
          _
        %p247 = scmp.lt.s32.totalorder %s22, 1
        %s248 = scalar_select %p247, %s22, 1
        %s249 = smul.addr %s248, 2
        %s250 = smul.addr %s249, 4
        %s251 = scalar_lea.vmem %s0, %s250
        %p252 = pneg %p43
        %p253 = pneg %p40
        %p254 = pneg %p64
        %p255 = pneg %p61
        %p256 = pneg %p85
        %p257 = pneg %p82
        %p258 = pneg %p106
        %p259 = pneg %p103
        %p260 = pneg %p127
        %p261 = pneg %p124
        %p262 = pneg %p148
        %p263 = pneg %p145
        %p264 = pneg %p174
        %p265 = pneg %p171
        %s266 = sand.u32 %s161, 1
        %s267 = scalar_lea.sflag [#allocation4], %s266
        %s268 = sand.u32 %s161, 1
        %s269 = smul.addr %s268, 8
        %s270 = scalar_lea.vmem [#allocation7], %s269
        %p271 = scmp.lt.s32.totalorder %s22, 1
        %s272 = scalar_select %p271, %s22, 1
        %s273 = smul.addr %s272, 2
        %s274 = smul.addr %s273, 4
        %s275 = scalar_lea.vmem %s0, %s274
        %v276 = vld [vmem:[%s275] sm:$0xff]
        %v277 = vld [vmem:[#allocation5] sm:$0xf]
        %v278 = vld [vmem:[%s2] sm:$0xf]
        %v279 = vld [vmem:[#allocation2] sm:$0xf]
        %v280 = vld [vmem:[%s5] sm:$0xff]
        %v281 = vld [vmem:[%s5 + $0x8] sm:$0xff]
        %v282 = vld [vmem:[%s5 + $0x10] sm:$0x1]
        %v283 = vld [vmem:[%s5 + $0x18] sm:$0x1]
        %v285 = vcombine.high %v276, %v276
        %vm287 = vcmask 1043456
        %v288 = vsel %vm287, %v276, 0.0
        %v289 = vrot.slane %v288, 4
        %v290 = vadd.f32 %v288, %v289
        %v291 = vrot.slane %v290, 2
        %v292 = vadd.f32 %v290, %v291
        %v293 = vrot.slane %v292, 1
        %v294 = vadd.f32 %v292, %v293
        %v295 = vsel %vm287, %v285, 0.0
        %v296 = vrot.slane %v295, 4
        %v297 = vadd.f32 %v295, %v296
        %v298 = vrot.slane %v297, 2
        %v299 = vadd.f32 %v297, %v298
        %v300 = vrot.slane %v299, 1
        %v301 = vadd.f32 %v299, %v300
        %v302 = vrcp.pop 4.0
        %v303 = vmul.f32 %v294, %v302
        %v304 = vmul.f32 %v301, %v302
        %v307 = vcombine.low %v303, %v304
        %v309 = vsub.f32 %v276, %v307
        %v310 = vmul.f32 %v309, %v309
        %v312 = vcombine.high %v310, %v310
        %v314 = vsel %vm287, %v310, 0.0
        %v315 = vrot.slane %v314, 4
        %v316 = vadd.f32 %v314, %v315
        %v317 = vrot.slane %v316, 2
        %v318 = vadd.f32 %v316, %v317
        %v319 = vrot.slane %v318, 1
        %v320 = vadd.f32 %v318, %v319
        %v321 = vsel %vm287, %v312, 0.0
        %v322 = vrot.slane %v321, 4
        %v323 = vadd.f32 %v321, %v322
        %v324 = vrot.slane %v323, 2
        %v325 = vadd.f32 %v323, %v324
        %v326 = vrot.slane %v325, 1
        %v327 = vadd.f32 %v325, %v326
        %v328 = vmul.f32 %v320, %v302
        %v329 = vmul.f32 %v327, %v302
        %v330 = vadd.f32 %v328, 1e-06
        %v331 = vadd.f32 %v329, 1e-06
        %v332 = vrsqrt.pop %v330
        %v333 = vrsqrt.pop %v331
        %v336 = vcombine.low %v332, %v333
        %v338 = vmul.f32 %v309, %v336
        %340 = vset.pattern.permute.xlu0 0
        %341 = vperm.xlu0 %340, %v277
        %v342 = vpop.permute.xlu0 %341
        %v344 = vunpack.c.l.s4 839922192
        %v345 = vunpack.c.0.s8 %v344
        %v346 = vlaneseq
        %v347 = vshrl.u32 %v346, 7
        %v348 = vsub.s32 %v345, %v347
        %v349 = vrot.slane %v342, %v348
        %v351 = vmul.f32 %v338, %v349
        %352 = vset.pattern.permute.xlu0 1
        %353 = vperm.xlu0 %352, %v277
        %v354 = vpop.permute.xlu0 %353
        %v356 = vunpack.c.l.s4 839922192
        %v357 = vunpack.c.0.s8 %v356
        %v358 = vlaneseq
        %v359 = vshrl.u32 %v358, 7
        %v360 = vsub.s32 %v357, %v359
        %v361 = vrot.slane %v354, %v360
        %v363 = vadd.f32 %v351, %v361
        %v364 = vld [vmem:[%s1] sm:$0xf]
        %365 = vset.pattern.permute.xlu0 2
        %366 = vperm.xlu0 %365, %v277
        %v367 = vpop.permute.xlu0 %366
        %v370 = vcombine.high %v363, %v363
        %vm371 = vcmask 31744
        %v373 = vsel %vm371, %v364, 0
        %v375 = vsel %vm287, %v363, 0
        %v377 = vsel %vm287, %v370, 0
        %379 = vmatprep.subr.mxu0 0.0
        %380 = vmatpush1.msra.mxu0 0.0
        %381 = vmatprep.subr.mxu0 0.0
        %382 = vmatpush1.msra.mxu0 0.0
        %383 = vmatprep.subr.mxu0 0.0
        %384 = vmatpush1.msra.mxu0 0.0
        %385 = vmatprep.subr.mxu0 0.0
        %386 = vmatpush1.msra.mxu0 0.0
        %387 = vmatprep.subr.mxu0 0.0
        %388 = vmatpush1.msra.mxu0 0.0
        %389 = vmatprep.subr.mxu0 0.0
        %390 = vmatpush1.msra.mxu0 0.0
        %391 = vmatprep.subr.mxu0 0.0
        %392 = vmatpush1.msra.mxu0 0.0
        %393 = vmatprep.subr.mxu0 0.0
        %394 = vmatpush1.msra.mxu0 0.0
        %395 = vmatprep.subr.mxu0 0.0
        %396 = vmatpush1.msra.mxu0 0.0
        %397 = vmatprep.subr.mxu0 0.0
        %398 = vmatpush1.msra.mxu0 0.0
        %399 = vmatprep.subr.mxu0 0.0
        %400 = vmatpush1.msra.mxu0 0.0
        %401 = vmatprep.subr.mxu0 0.0
        %402 = vmatpush1.msra.mxu0 0.0
        %403 = vmatprep.subr.mxu0 0.0
        %404 = vmatpush1.msra.mxu0 0.0
        %405 = vmatprep.subr.mxu0 0.0
        %406 = vmatpush1.msra.mxu0 0.0
        %407 = vmatprep.subr.mxu0 0.0
        %408 = vmatpush1.msra.mxu0 0.0
        %409 = vmatprep.subr.mxu0 %v377
        %410 = vmatpush1.msra.mxu0 %v375
        %411 = vmatprep.subr.mxu0 0.0
        %412 = vmatpush2.msra.mxu0 0.0
        %413 = vmatprep.subr.mxu0 0.0
        %414 = vmatpush2.msra.mxu0 0.0
        %415 = vmatprep.subr.mxu0 0.0
        %416 = vmatpush2.msra.mxu0 0.0
        %417 = vmatprep.subr.mxu0 0.0
        %418 = vmatpush2.msra.mxu0 0.0
        %419 = vmatprep.subr.mxu0 0.0
        %420 = vmatpush2.msra.mxu0 0.0
        %421 = vmatprep.subr.mxu0 0.0
        %422 = vmatpush2.msra.mxu0 0.0
        %423 = vmatprep.subr.mxu0 0.0
        %424 = vmatpush2.msra.mxu0 0.0
        %425 = vmatprep.subr.mxu0 0.0
        %426 = vmatpush2.msra.mxu0 0.0
        %427 = vmatprep.subr.mxu0 0.0
        %428 = vmatpush2.msra.mxu0 0.0
        %429 = vmatprep.subr.mxu0 0.0
        %430 = vmatpush2.msra.mxu0 0.0
        %431 = vmatprep.subr.mxu0 0.0
        %432 = vmatpush2.msra.mxu0 0.0
        %433 = vmatprep.subr.mxu0 0.0
        %434 = vmatpush2.msra.mxu0 0.0
        %435 = vmatprep.subr.mxu0 0.0
        %436 = vmatpush2.msra.mxu0 0.0
        %437 = vmatprep.subr.mxu0 0.0
        %438 = vmatpush2.msra.mxu0 0.0
        %439 = vmatprep.subr.mxu0 0.0
        %440 = vmatpush2.msra.mxu0 0.0
        %441 = vmatprep.subr.mxu0 0.0
        %442 = vmatpush2.msra.mxu0 0.0
        %443 = vmatprep.mubr.f32.mxu0 0.0
        %444 = vmatmul.mubr.f32.gmra.mxu0 %v373
        %v445 = vpop.f32.mrf.mxu0
        %v446 = vadd.f32 %v367, %v445
        %v447 = vpop.f32.mrf.mxu0
        %v448 = vadd.f32 %v367, %v447
        %449 = vdwg.mxu0
        %451 = vset.pattern.permute.xlu0 4
        %452 = vperm.xlu0 %451, %v278
        %v453 = vpop.permute.xlu0 %452
        %v455 = vmul.f32 %v446, %v453
        %v456 = vmul.f32 %v448, %v453
        %457 = vrot.lane.b32.xlu0 %v446, 17
        %v458 = vpop.permute.xlu0 %457
        %459 = vrot.lane.b32.xlu0 %v448, 17
        %v460 = vpop.permute.xlu0 %459
        %v461 = vlaneseq
        %v462 = vand.u32 %v461, 127
        %vm463 = vcmp.lt.s32.totalorder %v462, 17
        %v464 = vsel %vm463, %v458, %v460
        %v465 = vsel %vm463, %v460, %v458
        %v466 = vlaneseq
        %v467 = vshrl.u32 %v466, 7
        %v468 = vsub.s32 0, %v467
        %v469 = vrot.slane %v280, %v468
        %v470 = vlaneseq
        %v471 = vshrl.u32 %v470, 7
        %v472 = vsub.s32 0, %v471
        %v473 = vrot.slane %v281, %v472
        %v474 = vmul.f32 %v465, %v469
        %v475 = vmul.f32 %v464, %v473
        %476 = vset.pattern.permute.xlu0 0
        %477 = vperm.xlu0 %476, %v278
        %v478 = vpop.permute.xlu0 %477
        %v480 = vmul.f32 %v474, %v478
        %v481 = vmul.f32 %v475, %v478
        %v482 = vadd.f32 %v455, %v480
        %v483 = vadd.f32 %v456, %v481
        %484 = vrot.lane.b32.xlu0 %v446, 16
        %v485 = vpop.permute.xlu0 %484
        %486 = vrot.lane.b32.xlu0 %v448, 16
        %v487 = vpop.permute.xlu0 %486
        %vm488 = vcmp.lt.s32.totalorder %v462, 16
        %v489 = vsel %vm488, %v485, %v487
        %v490 = vsel %vm488, %v487, %v485
        %v491 = vlaneseq
        %v492 = vshrl.u32 %v491, 7
        %v493 = vsub.s32 1, %v492
        %v494 = vrot.slane %v280, %v493
        %v495 = vlaneseq
        %v496 = vshrl.u32 %v495, 7
        %v497 = vsub.s32 1, %v496
        %v498 = vrot.slane %v281, %v497
        %v499 = vmul.f32 %v490, %v494
        %v500 = vmul.f32 %v489, %v498
        %501 = vset.pattern.permute.xlu0 1
        %502 = vperm.xlu0 %501, %v278
        %v503 = vpop.permute.xlu0 %502
        %v505 = vmul.f32 %v499, %v503
        %v506 = vmul.f32 %v500, %v503
        %v507 = vadd.f32 %v482, %v505
        %v508 = vadd.f32 %v483, %v506
        %509 = vrot.lane.b32.xlu0 %v446, 15
        %v510 = vpop.permute.xlu0 %509
        %511 = vrot.lane.b32.xlu0 %v448, 15
        %v512 = vpop.permute.xlu0 %511
        %vm513 = vcmp.lt.s32.totalorder %v462, 15
        %v514 = vsel %vm513, %v510, %v512
        %v515 = vsel %vm513, %v512, %v510
        %v516 = vlaneseq
        %v517 = vshrl.u32 %v516, 7
        %v518 = vsub.s32 2, %v517
        %v519 = vrot.slane %v280, %v518
        %v520 = vlaneseq
        %v521 = vshrl.u32 %v520, 7
        %v522 = vsub.s32 2, %v521
        %v523 = vrot.slane %v281, %v522
        %v524 = vmul.f32 %v515, %v519
        %v525 = vmul.f32 %v514, %v523
        %526 = vset.pattern.permute.xlu0 2
        %527 = vperm.xlu0 %526, %v278
        %v528 = vpop.permute.xlu0 %527
        %v530 = vmul.f32 %v524, %v528
        %v531 = vmul.f32 %v525, %v528
        %v532 = vadd.f32 %v507, %v530
        %v533 = vadd.f32 %v508, %v531
        %534 = vrot.lane.b32.xlu0 %v446, 1
        %v535 = vpop.permute.xlu0 %534
        %536 = vrot.lane.b32.xlu0 %v448, 1
        %v537 = vpop.permute.xlu0 %536
        %vm538 = vcmp.lt.s32.totalorder %v462, 1
        %v539 = vsel %vm538, %v535, %v537
        %v540 = vsel %vm538, %v537, %v535
        %v541 = vlaneseq
        %v542 = vshrl.u32 %v541, 7
        %v543 = vsub.s32 3, %v542
        %v544 = vrot.slane %v280, %v543
        %v545 = vlaneseq
        %v546 = vshrl.u32 %v545, 7
        %v547 = vsub.s32 3, %v546
        %v548 = vrot.slane %v281, %v547
        %v549 = vmul.f32 %v540, %v544
        %v550 = vmul.f32 %v539, %v548
        %551 = vset.pattern.permute.xlu0 3
        %552 = vperm.xlu0 %551, %v278
        %v553 = vpop.permute.xlu0 %552
        %v555 = vmul.f32 %v549, %v553
        %v556 = vmul.f32 %v550, %v553
        %v557 = vadd.f32 %v532, %v555
        %v558 = vadd.f32 %v533, %v556
        %559 = vrot.lane.b32.xlu0 %v446, 127
        %v560 = vpop.permute.xlu0 %559
        %561 = vrot.lane.b32.xlu0 %v448, 127
        %v562 = vpop.permute.xlu0 %561
        %vm563 = vcmp.lt.s32.totalorder %v462, 127
        %v564 = vsel %vm563, %v560, %v562
        %v565 = vsel %vm563, %v562, %v560
        %v566 = vlaneseq
        %v567 = vshrl.u32 %v566, 7
        %v568 = vsub.s32 5, %v567
        %v569 = vrot.slane %v280, %v568
        %v570 = vlaneseq
        %v571 = vshrl.u32 %v570, 7
        %v572 = vsub.s32 5, %v571
        %v573 = vrot.slane %v281, %v572
        %v574 = vmul.f32 %v564, %v569
        %v575 = vmul.f32 %v565, %v573
        %576 = vset.pattern.permute.xlu0 5
        %577 = vperm.xlu0 %576, %v278
        %v578 = vpop.permute.xlu0 %577
        %v580 = vmul.f32 %v574, %v578
        %v581 = vmul.f32 %v575, %v578
        %v582 = vadd.f32 %v557, %v580
        %v583 = vadd.f32 %v558, %v581
        %584 = vrot.lane.b32.xlu0 %v446, 113
        %v585 = vpop.permute.xlu0 %584
        %586 = vrot.lane.b32.xlu0 %v448, 113
        %v587 = vpop.permute.xlu0 %586
        %vm588 = vcmp.lt.s32.totalorder %v462, 113
        %v589 = vsel %vm588, %v585, %v587
        %v590 = vsel %vm588, %v587, %v585
        %v591 = vlaneseq
        %v592 = vshrl.u32 %v591, 7
        %v593 = vsub.s32 6, %v592
        %v594 = vrot.slane %v280, %v593
        %v595 = vlaneseq
        %v596 = vshrl.u32 %v595, 7
        %v597 = vsub.s32 6, %v596
        %v598 = vrot.slane %v281, %v597
        %v599 = vmul.f32 %v589, %v594
        %v600 = vmul.f32 %v590, %v598
        %601 = vset.pattern.permute.xlu0 6
        %602 = vperm.xlu0 %601, %v278
        %v603 = vpop.permute.xlu0 %602
        %v605 = vmul.f32 %v599, %v603
        %v606 = vmul.f32 %v600, %v603
        %v607 = vadd.f32 %v582, %v605
        %v608 = vadd.f32 %v583, %v606
        %609 = vrot.lane.b32.xlu0 %v446, 112
        %v610 = vpop.permute.xlu0 %609
        %611 = vrot.lane.b32.xlu0 %v448, 112
        %v612 = vpop.permute.xlu0 %611
        %vm613 = vcmp.lt.s32.totalorder %v462, 112
        %v614 = vsel %vm613, %v610, %v612
        %v615 = vsel %vm613, %v612, %v610
        %v616 = vlaneseq
        %v617 = vshrl.u32 %v616, 7
        %v618 = vsub.s32 7, %v617
        %v619 = vrot.slane %v280, %v618
        %v620 = vlaneseq
        %v621 = vshrl.u32 %v620, 7
        %v622 = vsub.s32 7, %v621
        %v623 = vrot.slane %v281, %v622
        %v624 = vmul.f32 %v614, %v619
        %v625 = vmul.f32 %v615, %v623
        %626 = vset.pattern.permute.xlu0 7
        %627 = vperm.xlu0 %626, %v278
        %v628 = vpop.permute.xlu0 %627
        %v630 = vmul.f32 %v624, %v628
        %v631 = vmul.f32 %v625, %v628
        %v632 = vadd.f32 %v607, %v630
        %v633 = vadd.f32 %v608, %v631
        %634 = vrot.lane.b32.xlu0 %v446, 111
        %v635 = vpop.permute.xlu0 %634
        %636 = vrot.lane.b32.xlu0 %v448, 111
        %v637 = vpop.permute.xlu0 %636
        %vm638 = vcmp.lt.s32.totalorder %v462, 111
        %v639 = vsel %vm638, %v635, %v637
        %v640 = vsel %vm638, %v637, %v635
        %v641 = vlaneseq
        %v642 = vshrl.u32 %v641, 7
        %v643 = vsub.s32 0, %v642
        %v644 = vrot.slane %v282, %v643
        %v645 = vlaneseq
        %v646 = vshrl.u32 %v645, 7
        %v647 = vsub.s32 0, %v646
        %v648 = vrot.slane %v283, %v647
        %v649 = vmul.f32 %v639, %v644
        %v650 = vmul.f32 %v640, %v648
        %651 = vset.pattern.permute.xlu0 8
        %652 = vperm.xlu0 %651, %v278
        %v653 = vpop.permute.xlu0 %652
        %v655 = vmul.f32 %v649, %v653
        %v656 = vmul.f32 %v650, %v653
        %v657 = vadd.f32 %v632, %v655
        %v658 = vadd.f32 %v633, %v656
        %659 = vset.pattern.permute.xlu0 4
        %660 = vperm.xlu0 %659, %v277
        %v661 = vpop.permute.xlu0 %660
        %v663 = vadd.f32 %v657, %v661
        %v664 = vadd.f32 %v658, %v661
        %s665 = scalar_lea.vmem %s1, 4
        %v666 = vld [vmem:[%s665] sm:$0xf]
        %667 = vset.pattern.permute.xlu0 3
        %668 = vperm.xlu0 %667, %v277
        %v669 = vpop.permute.xlu0 %668
        %v672 = vsel %vm371, %v666, 0
        %674 = vmatprep.subr.mxu0 0.0
        %675 = vmatpush1.msra.mxu0 0.0
        %676 = vmatprep.subr.mxu0 0.0
        %677 = vmatpush1.msra.mxu0 0.0
        %678 = vmatprep.subr.mxu0 0.0
        %679 = vmatpush1.msra.mxu0 0.0
        %680 = vmatprep.subr.mxu0 0.0
        %681 = vmatpush1.msra.mxu0 0.0
        %682 = vmatprep.subr.mxu0 0.0
        %683 = vmatpush1.msra.mxu0 0.0
        %684 = vmatprep.subr.mxu0 0.0
        %685 = vmatpush1.msra.mxu0 0.0
        %686 = vmatprep.subr.mxu0 0.0
        %687 = vmatpush1.msra.mxu0 0.0
        %688 = vmatprep.subr.mxu0 0.0
        %689 = vmatpush1.msra.mxu0 0.0
        %690 = vmatprep.subr.mxu0 0.0
        %691 = vmatpush1.msra.mxu0 0.0
        %692 = vmatprep.subr.mxu0 0.0
        %693 = vmatpush1.msra.mxu0 0.0
        %694 = vmatprep.subr.mxu0 0.0
        %695 = vmatpush1.msra.mxu0 0.0
        %696 = vmatprep.subr.mxu0 0.0
        %697 = vmatpush1.msra.mxu0 0.0
        %698 = vmatprep.subr.mxu0 0.0
        %699 = vmatpush1.msra.mxu0 0.0
        %700 = vmatprep.subr.mxu0 0.0
        %701 = vmatpush1.msra.mxu0 0.0
        %702 = vmatprep.subr.mxu0 0.0
        %703 = vmatpush1.msra.mxu0 0.0
        %704 = vmatprep.subr.mxu0 %v377
        %705 = vmatpush1.msra.mxu0 %v375
        %706 = vmatprep.subr.mxu0 0.0
        %707 = vmatpush2.msra.mxu0 0.0
        %708 = vmatprep.subr.mxu0 0.0
        %709 = vmatpush2.msra.mxu0 0.0
        %710 = vmatprep.subr.mxu0 0.0
        %711 = vmatpush2.msra.mxu0 0.0
        %712 = vmatprep.subr.mxu0 0.0
        %713 = vmatpush2.msra.mxu0 0.0
        %714 = vmatprep.subr.mxu0 0.0
        %715 = vmatpush2.msra.mxu0 0.0
        %716 = vmatprep.subr.mxu0 0.0
        %717 = vmatpush2.msra.mxu0 0.0
        %718 = vmatprep.subr.mxu0 0.0
        %719 = vmatpush2.msra.mxu0 0.0
        %720 = vmatprep.subr.mxu0 0.0
        %721 = vmatpush2.msra.mxu0 0.0
        %722 = vmatprep.subr.mxu0 0.0
        %723 = vmatpush2.msra.mxu0 0.0
        %724 = vmatprep.subr.mxu0 0.0
        %725 = vmatpush2.msra.mxu0 0.0
        %726 = vmatprep.subr.mxu0 0.0
        %727 = vmatpush2.msra.mxu0 0.0
        %728 = vmatprep.subr.mxu0 0.0
        %729 = vmatpush2.msra.mxu0 0.0
        %730 = vmatprep.subr.mxu0 0.0
        %731 = vmatpush2.msra.mxu0 0.0
        %732 = vmatprep.subr.mxu0 0.0
        %733 = vmatpush2.msra.mxu0 0.0
        %734 = vmatprep.subr.mxu0 0.0
        %735 = vmatpush2.msra.mxu0 0.0
        %736 = vmatprep.subr.mxu0 0.0
        %737 = vmatpush2.msra.mxu0 0.0
        %738 = vmatprep.mubr.f32.mxu0 0.0
        %739 = vmatmul.mubr.f32.gmra.mxu0 %v672
        %v740 = vpop.f32.mrf.mxu0
        %v741 = vadd.f32 %v669, %v740
        %v742 = vpop.f32.mrf.mxu0
        %v743 = vadd.f32 %v669, %v742
        %744 = vdwg.mxu0
        %746 = vset.pattern.permute.xlu0 4
        %747 = vperm.xlu0 %746, %v279
        %v748 = vpop.permute.xlu0 %747
        %v750 = vmul.f32 %v741, %v748
        %v751 = vmul.f32 %v743, %v748
        %752 = vrot.lane.b32.xlu0 %v741, 17
        %v753 = vpop.permute.xlu0 %752
        %754 = vrot.lane.b32.xlu0 %v743, 17
        %v755 = vpop.permute.xlu0 %754
        %v756 = vsel %vm463, %v753, %v755
        %v757 = vsel %vm463, %v755, %v753
        %v758 = vmul.f32 %v757, %v469
        %v759 = vmul.f32 %v756, %v473
        %760 = vset.pattern.permute.xlu0 0
        %761 = vperm.xlu0 %760, %v279
        %v762 = vpop.permute.xlu0 %761
        %v764 = vmul.f32 %v758, %v762
        %v765 = vmul.f32 %v759, %v762
        %v766 = vadd.f32 %v750, %v764
        %v767 = vadd.f32 %v751, %v765
        %768 = vrot.lane.b32.xlu0 %v741, 16
        %v769 = vpop.permute.xlu0 %768
        %770 = vrot.lane.b32.xlu0 %v743, 16
        %v771 = vpop.permute.xlu0 %770
        %v772 = vsel %vm488, %v769, %v771
        %v773 = vsel %vm488, %v771, %v769
        %v774 = vmul.f32 %v773, %v494
        %v775 = vmul.f32 %v772, %v498
        %776 = vset.pattern.permute.xlu0 1
        %777 = vperm.xlu0 %776, %v279
        %v778 = vpop.permute.xlu0 %777
        %v780 = vmul.f32 %v774, %v778
        %v781 = vmul.f32 %v775, %v778
        %v782 = vadd.f32 %v766, %v780
        %v783 = vadd.f32 %v767, %v781
        %784 = vrot.lane.b32.xlu0 %v741, 15
        %v785 = vpop.permute.xlu0 %784
        %786 = vrot.lane.b32.xlu0 %v743, 15
        %v787 = vpop.permute.xlu0 %786
        %v788 = vsel %vm513, %v785, %v787
        %v789 = vsel %vm513, %v787, %v785
        %v790 = vmul.f32 %v789, %v519
        %v791 = vmul.f32 %v788, %v523
        %792 = vset.pattern.permute.xlu0 2
        %793 = vperm.xlu0 %792, %v279
        %v794 = vpop.permute.xlu0 %793
        %v796 = vmul.f32 %v790, %v794
        %v797 = vmul.f32 %v791, %v794
        %v798 = vadd.f32 %v782, %v796
        %v799 = vadd.f32 %v783, %v797
        %800 = vrot.lane.b32.xlu0 %v741, 1
        %v801 = vpop.permute.xlu0 %800
        %802 = vrot.lane.b32.xlu0 %v743, 1
        %v803 = vpop.permute.xlu0 %802
        %v804 = vsel %vm538, %v801, %v803
        %v805 = vsel %vm538, %v803, %v801
        %v806 = vmul.f32 %v805, %v544
        %v807 = vmul.f32 %v804, %v548
        %808 = vset.pattern.permute.xlu0 3
        %809 = vperm.xlu0 %808, %v279
        %v810 = vpop.permute.xlu0 %809
        %v812 = vmul.f32 %v806, %v810
        %v813 = vmul.f32 %v807, %v810
        %v814 = vadd.f32 %v798, %v812
        %v815 = vadd.f32 %v799, %v813
        %816 = vrot.lane.b32.xlu0 %v741, 127
        %v817 = vpop.permute.xlu0 %816
        %818 = vrot.lane.b32.xlu0 %v743, 127
        %v819 = vpop.permute.xlu0 %818
        %v820 = vsel %vm563, %v817, %v819
        %v821 = vsel %vm563, %v819, %v817
        %v822 = vmul.f32 %v820, %v569
        %v823 = vmul.f32 %v821, %v573
        %824 = vset.pattern.permute.xlu0 5
        %825 = vperm.xlu0 %824, %v279
        %v826 = vpop.permute.xlu0 %825
        %v828 = vmul.f32 %v822, %v826
        %v829 = vmul.f32 %v823, %v826
        %v830 = vadd.f32 %v814, %v828
        %v831 = vadd.f32 %v815, %v829
        %832 = vrot.lane.b32.xlu0 %v741, 113
        %v833 = vpop.permute.xlu0 %832
        %834 = vrot.lane.b32.xlu0 %v743, 113
        %v835 = vpop.permute.xlu0 %834
        %v836 = vsel %vm588, %v833, %v835
        %v837 = vsel %vm588, %v835, %v833
        %v838 = vmul.f32 %v836, %v594
        %v839 = vmul.f32 %v837, %v598
        %840 = vset.pattern.permute.xlu0 6
        %841 = vperm.xlu0 %840, %v279
        %v842 = vpop.permute.xlu0 %841
        %v844 = vmul.f32 %v838, %v842
        %v845 = vmul.f32 %v839, %v842
        %v846 = vadd.f32 %v830, %v844
        %v847 = vadd.f32 %v831, %v845
        %848 = vrot.lane.b32.xlu0 %v741, 112
        %v849 = vpop.permute.xlu0 %848
        %850 = vrot.lane.b32.xlu0 %v743, 112
        %v851 = vpop.permute.xlu0 %850
        %v852 = vsel %vm613, %v849, %v851
        %v853 = vsel %vm613, %v851, %v849
        %v854 = vmul.f32 %v852, %v619
        %v855 = vmul.f32 %v853, %v623
        %856 = vset.pattern.permute.xlu0 7
        %857 = vperm.xlu0 %856, %v279
        %v858 = vpop.permute.xlu0 %857
        %v860 = vmul.f32 %v854, %v858
        %v861 = vmul.f32 %v855, %v858
        %v862 = vadd.f32 %v846, %v860
        %v863 = vadd.f32 %v847, %v861
        %864 = vrot.lane.b32.xlu0 %v741, 111
        %v865 = vpop.permute.xlu0 %864
        %866 = vrot.lane.b32.xlu0 %v743, 111
        %v867 = vpop.permute.xlu0 %866
        %v868 = vsel %vm638, %v865, %v867
        %v869 = vsel %vm638, %v867, %v865
        %v870 = vmul.f32 %v868, %v644
        %v871 = vmul.f32 %v869, %v648
        %872 = vset.pattern.permute.xlu0 8
        %873 = vperm.xlu0 %872, %v279
        %v874 = vpop.permute.xlu0 %873
        %v876 = vmul.f32 %v870, %v874
        %v877 = vmul.f32 %v871, %v874
        %v878 = vadd.f32 %v862, %v876
        %v879 = vadd.f32 %v863, %v877
        %880 = vset.pattern.permute.xlu0 5
        %881 = vperm.xlu0 %880, %v277
        %v882 = vpop.permute.xlu0 %881
        %v884 = vadd.f32 %v878, %v882
        %v885 = vadd.f32 %v879, %v882
        %v886 = vmul.f32 %v663, %v884
        %v887 = vmul.f32 %v664, %v885
        %v888 = vsel %vm287, %v886, 0.0
        %v889 = vsel %vm287, %v887, 0.0
        %v890 = vadd.f32 %v888, %v889
        %891 = vadd.xlane.f32.xlu0 %v890
        %v892 = vpop.xlane.xlu0 %891
        %v893 = vrcp.pop 256.0
        %v894 = vmul.f32 %v892, %v893
        %s895 = scalar_lea.vmem %s1, 8
        %v896 = vld [vmem:[%s895] sm:$0xf]
        %897 = vrot.lane.b32.xlu0 %v277, 122
        %v898 = vpop.permute.xlu0 %897
        %v901 = vsel %vm371, %v896, 0
        %v904 = vsel %vm287, %v894, 0
        %906 = vmatprep.subr.mxu0 0.0
        %907 = vmatpush1.msra.mxu0 0.0
        %908 = vmatprep.subr.mxu0 0.0
        %909 = vmatpush1.msra.mxu0 0.0
        %910 = vmatprep.subr.mxu0 0.0
        %911 = vmatpush1.msra.mxu0 0.0
        %912 = vmatprep.subr.mxu0 0.0
        %913 = vmatpush1.msra.mxu0 0.0
        %914 = vmatprep.subr.mxu0 0.0
        %915 = vmatpush1.msra.mxu0 0.0
        %916 = vmatprep.subr.mxu0 0.0
        %917 = vmatpush1.msra.mxu0 0.0
        %918 = vmatprep.subr.mxu0 0.0
        %919 = vmatpush1.msra.mxu0 0.0
        %920 = vmatprep.subr.mxu0 0.0
        %921 = vmatpush1.msra.mxu0 0.0
        %922 = vmatprep.subr.mxu0 0.0
        %923 = vmatpush1.msra.mxu0 0.0
        %924 = vmatprep.subr.mxu0 0.0
        %925 = vmatpush1.msra.mxu0 0.0
        %926 = vmatprep.subr.mxu0 0.0
        %927 = vmatpush1.msra.mxu0 0.0
        %928 = vmatprep.subr.mxu0 0.0
        %929 = vmatpush1.msra.mxu0 0.0
        %930 = vmatprep.subr.mxu0 0.0
        %931 = vmatpush1.msra.mxu0 0.0
        %932 = vmatprep.subr.mxu0 0.0
        %933 = vmatpush1.msra.mxu0 0.0
        %934 = vmatprep.subr.mxu0 0.0
        %935 = vmatpush1.msra.mxu0 0.0
        %936 = vmatprep.subr.mxu0 0.0
        %937 = vmatpush1.msra.mxu0 %v904
        %938 = vmatprep.subr.mxu0 0.0
        %939 = vmatpush2.msra.mxu0 0.0
        %940 = vmatprep.subr.mxu0 0.0
        %941 = vmatpush2.msra.mxu0 0.0
        %942 = vmatprep.subr.mxu0 0.0
        %943 = vmatpush2.msra.mxu0 0.0
        %944 = vmatprep.subr.mxu0 0.0
        %945 = vmatpush2.msra.mxu0 0.0
        %946 = vmatprep.subr.mxu0 0.0
        %947 = vmatpush2.msra.mxu0 0.0
        %948 = vmatprep.subr.mxu0 0.0
        %949 = vmatpush2.msra.mxu0 0.0
        %950 = vmatprep.subr.mxu0 0.0
        %951 = vmatpush2.msra.mxu0 0.0
        %952 = vmatprep.subr.mxu0 0.0
        %953 = vmatpush2.msra.mxu0 0.0
        %954 = vmatprep.subr.mxu0 0.0
        %955 = vmatpush2.msra.mxu0 0.0
        %956 = vmatprep.subr.mxu0 0.0
        %957 = vmatpush2.msra.mxu0 0.0
        %958 = vmatprep.subr.mxu0 0.0
        %959 = vmatpush2.msra.mxu0 0.0
        %960 = vmatprep.subr.mxu0 0.0
        %961 = vmatpush2.msra.mxu0 0.0
        %962 = vmatprep.subr.mxu0 0.0
        %963 = vmatpush2.msra.mxu0 0.0
        %964 = vmatprep.subr.mxu0 0.0
        %965 = vmatpush2.msra.mxu0 0.0
        %966 = vmatprep.subr.mxu0 0.0
        %967 = vmatpush2.msra.mxu0 0.0
        %968 = vmatprep.subr.mxu0 0.0
        %969 = vmatpush2.msra.mxu0 0.0
        %970 = vmatprep.mubr.f32.mxu0 0.0
        %971 = vmatmul.mubr.f32.gmra.mxu0 %v901
        %v972 = vpop.f32.mrf.mxu0
        %v973 = vadd.f32 %v898, %v972
        %v974 = vpop.f32.mrf.mxu0
        %975 = vdwg.mxu0
        %977 = vset.pattern.permute.xlu0 0
        %978 = vperm.xlu0 %977, %v973
        %v979 = vpop.permute.xlu0 %978
        %v981 = vmul.f32 %v886, %v979
        %v982 = vmul.f32 %v887, %v979
        %s983 = scalar_lea.vmem %s1, 12
        %v984 = vld [vmem:[%s983] sm:$0xf]
        %985 = vset.pattern.permute.xlu0 7
        %986 = vperm.xlu0 %985, %v277
        %v987 = vpop.permute.xlu0 %986
        %v990 = vsel %vm371, %v984, 0
        %v993 = vsel %vm287, %v981, 0
        %v996 = vsel %vm287, %v982, 0
        %998 = vmatprep.subr.mxu0 0.0
        %999 = vmatpush1.msra.mxu0 0.0
        %1000 = vmatprep.subr.mxu0 0.0
        %1001 = vmatpush1.msra.mxu0 0.0
        %1002 = vmatprep.subr.mxu0 0.0
        %1003 = vmatpush1.msra.mxu0 0.0
        %1004 = vmatprep.subr.mxu0 0.0
        %1005 = vmatpush1.msra.mxu0 0.0
        %1006 = vmatprep.subr.mxu0 0.0
        %1007 = vmatpush1.msra.mxu0 0.0
        %1008 = vmatprep.subr.mxu0 0.0
        %1009 = vmatpush1.msra.mxu0 0.0
        %1010 = vmatprep.subr.mxu0 0.0
        %1011 = vmatpush1.msra.mxu0 0.0
        %1012 = vmatprep.subr.mxu0 0.0
        %1013 = vmatpush1.msra.mxu0 0.0
        %1014 = vmatprep.subr.mxu0 0.0
        %1015 = vmatpush1.msra.mxu0 0.0
        %1016 = vmatprep.subr.mxu0 0.0
        %1017 = vmatpush1.msra.mxu0 0.0
        %1018 = vmatprep.subr.mxu0 0.0
        %1019 = vmatpush1.msra.mxu0 0.0
        %1020 = vmatprep.subr.mxu0 0.0
        %1021 = vmatpush1.msra.mxu0 0.0
        %1022 = vmatprep.subr.mxu0 0.0
        %1023 = vmatpush1.msra.mxu0 0.0
        %1024 = vmatprep.subr.mxu0 0.0
        %1025 = vmatpush1.msra.mxu0 0.0
        %1026 = vmatprep.subr.mxu0 0.0
        %1027 = vmatpush1.msra.mxu0 0.0
        %1028 = vmatprep.subr.mxu0 %v996
        %1029 = vmatpush1.msra.mxu0 %v993
        %1030 = vmatprep.subr.mxu0 0.0
        %1031 = vmatpush2.msra.mxu0 0.0
        %1032 = vmatprep.subr.mxu0 0.0
        %1033 = vmatpush2.msra.mxu0 0.0
        %1034 = vmatprep.subr.mxu0 0.0
        %1035 = vmatpush2.msra.mxu0 0.0
        %1036 = vmatprep.subr.mxu0 0.0
        %1037 = vmatpush2.msra.mxu0 0.0
        %1038 = vmatprep.subr.mxu0 0.0
        %1039 = vmatpush2.msra.mxu0 0.0
        %1040 = vmatprep.subr.mxu0 0.0
        %1041 = vmatpush2.msra.mxu0 0.0
        %1042 = vmatprep.subr.mxu0 0.0
        %1043 = vmatpush2.msra.mxu0 0.0
        %1044 = vmatprep.subr.mxu0 0.0
        %1045 = vmatpush2.msra.mxu0 0.0
        %1046 = vmatprep.subr.mxu0 0.0
        %1047 = vmatpush2.msra.mxu0 0.0
        %1048 = vmatprep.subr.mxu0 0.0
        %1049 = vmatpush2.msra.mxu0 0.0
        %1050 = vmatprep.subr.mxu0 0.0
        %1051 = vmatpush2.msra.mxu0 0.0
        %1052 = vmatprep.subr.mxu0 0.0
        %1053 = vmatpush2.msra.mxu0 0.0
        %1054 = vmatprep.subr.mxu0 0.0
        %1055 = vmatpush2.msra.mxu0 0.0
        %1056 = vmatprep.subr.mxu0 0.0
        %1057 = vmatpush2.msra.mxu0 0.0
        %1058 = vmatprep.subr.mxu0 0.0
        %1059 = vmatpush2.msra.mxu0 0.0
        %1060 = vmatprep.subr.mxu0 0.0
        %1061 = vmatpush2.msra.mxu0 0.0
        %1062 = vmatprep.mubr.f32.mxu0 0.0
        %1063 = vmatmul.mubr.f32.gmra.mxu0 %v990
        %v1064 = vpop.f32.mrf.mxu0
        %v1065 = vadd.f32 %v987, %v1064
        %v1066 = vpop.f32.mrf.mxu0
        %v1067 = vadd.f32 %v987, %v1066
        %1068 = vdwg.mxu0
        %1069 = vset.pattern.permute.xlu0 8
        %1070 = vperm.xlu0 %1069, %v277
        %v1071 = vpop.permute.xlu0 %1070
        %v1073 = vmul.f32 %v1065, %v1071
        %v1074 = vmul.f32 %v1067, %v1071
        %v1077 = vcombine.low %v1073, %v1074
        %v1079 = vadd.f32 %v276, %v1077
        %v1081 = vcombine.high %v1079, %v1079
        %v1083 = vsel %vm287, %v1079, 0.0
        %v1084 = vrot.slane %v1083, 4
        %v1085 = vadd.f32 %v1083, %v1084
        %v1086 = vrot.slane %v1085, 2
        %v1087 = vadd.f32 %v1085, %v1086
        %v1088 = vrot.slane %v1087, 1
        %v1089 = vadd.f32 %v1087, %v1088
        %v1090 = vsel %vm287, %v1081, 0.0
        %v1091 = vrot.slane %v1090, 4
        %v1092 = vadd.f32 %v1090, %v1091
        %v1093 = vrot.slane %v1092, 2
        %v1094 = vadd.f32 %v1092, %v1093
        %v1095 = vrot.slane %v1094, 1
        %v1096 = vadd.f32 %v1094, %v1095
        %v1097 = vmul.f32 %v1089, %v302
        %v1098 = vmul.f32 %v1096, %v302
        %v1101 = vcombine.low %v1097, %v1098
        %v1103 = vsub.f32 %v1079, %v1101
        %v1104 = vmul.f32 %v1103, %v1103
        %v1106 = vcombine.high %v1104, %v1104
        %v1108 = vsel %vm287, %v1104, 0.0
        %v1109 = vrot.slane %v1108, 4
        %v1110 = vadd.f32 %v1108, %v1109
        %v1111 = vrot.slane %v1110, 2
        %v1112 = vadd.f32 %v1110, %v1111
        %v1113 = vrot.slane %v1112, 1
        %v1114 = vadd.f32 %v1112, %v1113
        %v1115 = vsel %vm287, %v1106, 0.0
        %v1116 = vrot.slane %v1115, 4
        %v1117 = vadd.f32 %v1115, %v1116
        %v1118 = vrot.slane %v1117, 2
        %v1119 = vadd.f32 %v1117, %v1118
        %v1120 = vrot.slane %v1119, 1
        %v1121 = vadd.f32 %v1119, %v1120
        %v1122 = vmul.f32 %v1114, %v302
        %v1123 = vmul.f32 %v1121, %v302
        %v1124 = vadd.f32 %v1122, 1e-06
        %v1125 = vadd.f32 %v1123, 1e-06
        %v1126 = vrsqrt.pop %v1124
        %v1127 = vrsqrt.pop %v1125
        %v1130 = vcombine.low %v1126, %v1127
        %v1132 = vmul.f32 %v1103, %v1130
        %1133 = vset.pattern.permute.xlu0 9
        %1134 = vperm.xlu0 %1133, %v277
        %v1135 = vpop.permute.xlu0 %1134
        %v1137 = vunpack.c.l.s4 839922192
        %v1138 = vunpack.c.0.s8 %v1137
        %v1139 = vlaneseq
        %v1140 = vshrl.u32 %v1139, 7
        %v1141 = vsub.s32 %v1138, %v1140
        %v1142 = vrot.slane %v1135, %v1141
        %v1144 = vmul.f32 %v1132, %v1142
        %1145 = vset.pattern.permute.xlu0 10
        %1146 = vperm.xlu0 %1145, %v277
        %v1147 = vpop.permute.xlu0 %1146
        %v1149 = vunpack.c.l.s4 839922192
        %v1150 = vunpack.c.0.s8 %v1149
        %v1151 = vlaneseq
        %v1152 = vshrl.u32 %v1151, 7
        %v1153 = vsub.s32 %v1150, %v1152
        %v1154 = vrot.slane %v1147, %v1153
        %v1156 = vadd.f32 %v1144, %v1154
        %s1157 = scalar_lea.vmem %s1, 16
        %v1158 = vld [vmem:[%s1157] sm:$0xf]
        %1159 = vset.pattern.permute.xlu0 11
        %1160 = vperm.xlu0 %1159, %v277
        %v1161 = vpop.permute.xlu0 %1160
        %v1164 = vcombine.high %v1156, %v1156
        %v1166 = vsel %vm371, %v1158, 0
        %v1168 = vsel %vm287, %v1156, 0
        %v1170 = vsel %vm287, %v1164, 0
        %1172 = vmatprep.subr.mxu0 0.0
        %1173 = vmatpush1.msra.mxu0 0.0
        %1174 = vmatprep.subr.mxu0 0.0
        %1175 = vmatpush1.msra.mxu0 0.0
        %1176 = vmatprep.subr.mxu0 0.0
        %1177 = vmatpush1.msra.mxu0 0.0
        %1178 = vmatprep.subr.mxu0 0.0
        %1179 = vmatpush1.msra.mxu0 0.0
        %1180 = vmatprep.subr.mxu0 0.0
        %1181 = vmatpush1.msra.mxu0 0.0
        %1182 = vmatprep.subr.mxu0 0.0
        %1183 = vmatpush1.msra.mxu0 0.0
        %1184 = vmatprep.subr.mxu0 0.0
        %1185 = vmatpush1.msra.mxu0 0.0
        %1186 = vmatprep.subr.mxu0 0.0
        %1187 = vmatpush1.msra.mxu0 0.0
        %1188 = vmatprep.subr.mxu0 0.0
        %1189 = vmatpush1.msra.mxu0 0.0
        %1190 = vmatprep.subr.mxu0 0.0
        %1191 = vmatpush1.msra.mxu0 0.0
        %1192 = vmatprep.subr.mxu0 0.0
        %1193 = vmatpush1.msra.mxu0 0.0
        %1194 = vmatprep.subr.mxu0 0.0
        %1195 = vmatpush1.msra.mxu0 0.0
        %1196 = vmatprep.subr.mxu0 0.0
        %1197 = vmatpush1.msra.mxu0 0.0
        %1198 = vmatprep.subr.mxu0 0.0
        %1199 = vmatpush1.msra.mxu0 0.0
        %1200 = vmatprep.subr.mxu0 0.0
        %1201 = vmatpush1.msra.mxu0 0.0
        %1202 = vmatprep.subr.mxu0 %v1170
        %1203 = vmatpush1.msra.mxu0 %v1168
        %1204 = vmatprep.subr.mxu0 0.0
        %1205 = vmatpush2.msra.mxu0 0.0
        %1206 = vmatprep.subr.mxu0 0.0
        %1207 = vmatpush2.msra.mxu0 0.0
        %1208 = vmatprep.subr.mxu0 0.0
        %1209 = vmatpush2.msra.mxu0 0.0
        %1210 = vmatprep.subr.mxu0 0.0
        %1211 = vmatpush2.msra.mxu0 0.0
        %1212 = vmatprep.subr.mxu0 0.0
        %1213 = vmatpush2.msra.mxu0 0.0
        %1214 = vmatprep.subr.mxu0 0.0
        %1215 = vmatpush2.msra.mxu0 0.0
        %1216 = vmatprep.subr.mxu0 0.0
        %1217 = vmatpush2.msra.mxu0 0.0
        %1218 = vmatprep.subr.mxu0 0.0
        %1219 = vmatpush2.msra.mxu0 0.0
        %1220 = vmatprep.subr.mxu0 0.0
        %1221 = vmatpush2.msra.mxu0 0.0
        %1222 = vmatprep.subr.mxu0 0.0
        %1223 = vmatpush2.msra.mxu0 0.0
        %1224 = vmatprep.subr.mxu0 0.0
        %1225 = vmatpush2.msra.mxu0 0.0
        %1226 = vmatprep.subr.mxu0 0.0
        %1227 = vmatpush2.msra.mxu0 0.0
        %1228 = vmatprep.subr.mxu0 0.0
        %1229 = vmatpush2.msra.mxu0 0.0
        %1230 = vmatprep.subr.mxu0 0.0
        %1231 = vmatpush2.msra.mxu0 0.0
        %1232 = vmatprep.subr.mxu0 0.0
        %1233 = vmatpush2.msra.mxu0 0.0
        %1234 = vmatprep.subr.mxu0 0.0
        %1235 = vmatpush2.msra.mxu0 0.0
        %1236 = vmatprep.mubr.f32.mxu0 0.0
        %1237 = vmatmul.mubr.f32.gmra.mxu0 %v1166
        %v1238 = vpop.f32.mrf.mxu0
        %v1239 = vadd.f32 %v1161, %v1238
        %v1240 = vpop.f32.mrf.mxu0
        %v1241 = vadd.f32 %v1161, %v1240
        %1242 = vdwg.mxu0
        %s1243 = scalar_lea.vmem %s1, 20
        %v1244 = vld [vmem:[%s1243] sm:$0xf]
        %1245 = vset.pattern.permute.xlu0 12
        %1246 = vperm.xlu0 %1245, %v277
        %v1247 = vpop.permute.xlu0 %1246
        %v1250 = vsel %vm371, %v1244, 0
        %1252 = vmatprep.subr.mxu0 0.0
        %1253 = vmatpush1.msra.mxu0 0.0
        %1254 = vmatprep.subr.mxu0 0.0
        %1255 = vmatpush1.msra.mxu0 0.0
        %1256 = vmatprep.subr.mxu0 0.0
        %1257 = vmatpush1.msra.mxu0 0.0
        %1258 = vmatprep.subr.mxu0 0.0
        %1259 = vmatpush1.msra.mxu0 0.0
        %1260 = vmatprep.subr.mxu0 0.0
        %1261 = vmatpush1.msra.mxu0 0.0
        %1262 = vmatprep.subr.mxu0 0.0
        %1263 = vmatpush1.msra.mxu0 0.0
        %1264 = vmatprep.subr.mxu0 0.0
        %1265 = vmatpush1.msra.mxu0 0.0
        %1266 = vmatprep.subr.mxu0 0.0
        %1267 = vmatpush1.msra.mxu0 0.0
        %1268 = vmatprep.subr.mxu0 0.0
        %1269 = vmatpush1.msra.mxu0 0.0
        %1270 = vmatprep.subr.mxu0 0.0
        %1271 = vmatpush1.msra.mxu0 0.0
        %1272 = vmatprep.subr.mxu0 0.0
        %1273 = vmatpush1.msra.mxu0 0.0
        %1274 = vmatprep.subr.mxu0 0.0
        %1275 = vmatpush1.msra.mxu0 0.0
        %1276 = vmatprep.subr.mxu0 0.0
        %1277 = vmatpush1.msra.mxu0 0.0
        %1278 = vmatprep.subr.mxu0 0.0
        %1279 = vmatpush1.msra.mxu0 0.0
        %1280 = vmatprep.subr.mxu0 0.0
        %1281 = vmatpush1.msra.mxu0 0.0
        %1282 = vmatprep.subr.mxu0 %v1170
        %1283 = vmatpush1.msra.mxu0 %v1168
        %1284 = vmatprep.subr.mxu0 0.0
        %1285 = vmatpush2.msra.mxu0 0.0
        %1286 = vmatprep.subr.mxu0 0.0
        %1287 = vmatpush2.msra.mxu0 0.0
        %1288 = vmatprep.subr.mxu0 0.0
        %1289 = vmatpush2.msra.mxu0 0.0
        %1290 = vmatprep.subr.mxu0 0.0
        %1291 = vmatpush2.msra.mxu0 0.0
        %1292 = vmatprep.subr.mxu0 0.0
        %1293 = vmatpush2.msra.mxu0 0.0
        %1294 = vmatprep.subr.mxu0 0.0
        %1295 = vmatpush2.msra.mxu0 0.0
        %1296 = vmatprep.subr.mxu0 0.0
        %1297 = vmatpush2.msra.mxu0 0.0
        %1298 = vmatprep.subr.mxu0 0.0
        %1299 = vmatpush2.msra.mxu0 0.0
        %1300 = vmatprep.subr.mxu0 0.0
        %1301 = vmatpush2.msra.mxu0 0.0
        %1302 = vmatprep.subr.mxu0 0.0
        %1303 = vmatpush2.msra.mxu0 0.0
        %1304 = vmatprep.subr.mxu0 0.0
        %1305 = vmatpush2.msra.mxu0 0.0
        %1306 = vmatprep.subr.mxu0 0.0
        %1307 = vmatpush2.msra.mxu0 0.0
        %1308 = vmatprep.subr.mxu0 0.0
        %1309 = vmatpush2.msra.mxu0 0.0
        %1310 = vmatprep.subr.mxu0 0.0
        %1311 = vmatpush2.msra.mxu0 0.0
        %1312 = vmatprep.subr.mxu0 0.0
        %1313 = vmatpush2.msra.mxu0 0.0
        %1314 = vmatprep.subr.mxu0 0.0
        %1315 = vmatpush2.msra.mxu0 0.0
        %1316 = vmatprep.mubr.f32.mxu0 0.0
        %1317 = vmatmul.mubr.f32.gmra.mxu0 %v1250
        %v1318 = vpop.f32.mrf.mxu0
        %v1319 = vadd.f32 %v1247, %v1318
        %v1320 = vpop.f32.mrf.mxu0
        %v1321 = vadd.f32 %v1247, %v1320
        %1322 = vdwg.mxu0
        %v1323 = vmul.f32 %v1239, %v1319
        %v1324 = vmul.f32 %v1241, %v1321
        %s1325 = scalar_lea.vmem %s1, 24
        %v1326 = vld [vmem:[%s1325] sm:$0xf]
        %1327 = vset.pattern.permute.xlu0 13
        %1328 = vperm.xlu0 %1327, %v277
        %v1329 = vpop.permute.xlu0 %1328
        %v1332 = vsel %vm371, %v1326, 0
        %v1335 = vsel %vm287, %v1323, 0
        %v1338 = vsel %vm287, %v1324, 0
        %1340 = vmatprep.subr.mxu0 0.0
        %1341 = vmatpush1.msra.mxu0 0.0
        %1342 = vmatprep.subr.mxu0 0.0
        %1343 = vmatpush1.msra.mxu0 0.0
        %1344 = vmatprep.subr.mxu0 0.0
        %1345 = vmatpush1.msra.mxu0 0.0
        %1346 = vmatprep.subr.mxu0 0.0
        %1347 = vmatpush1.msra.mxu0 0.0
        %1348 = vmatprep.subr.mxu0 0.0
        %1349 = vmatpush1.msra.mxu0 0.0
        %1350 = vmatprep.subr.mxu0 0.0
        %1351 = vmatpush1.msra.mxu0 0.0
        %1352 = vmatprep.subr.mxu0 0.0
        %1353 = vmatpush1.msra.mxu0 0.0
        %1354 = vmatprep.subr.mxu0 0.0
        %1355 = vmatpush1.msra.mxu0 0.0
        %1356 = vmatprep.subr.mxu0 0.0
        %1357 = vmatpush1.msra.mxu0 0.0
        %1358 = vmatprep.subr.mxu0 0.0
        %1359 = vmatpush1.msra.mxu0 0.0
        %1360 = vmatprep.subr.mxu0 0.0
        %1361 = vmatpush1.msra.mxu0 0.0
        %1362 = vmatprep.subr.mxu0 0.0
        %1363 = vmatpush1.msra.mxu0 0.0
        %1364 = vmatprep.subr.mxu0 0.0
        %1365 = vmatpush1.msra.mxu0 0.0
        %1366 = vmatprep.subr.mxu0 0.0
        %1367 = vmatpush1.msra.mxu0 0.0
        %1368 = vmatprep.subr.mxu0 0.0
        %1369 = vmatpush1.msra.mxu0 0.0
        %1370 = vmatprep.subr.mxu0 %v1338
        %1371 = vmatpush1.msra.mxu0 %v1335
        %1372 = vmatprep.subr.mxu0 0.0
        %1373 = vmatpush2.msra.mxu0 0.0
        %1374 = vmatprep.subr.mxu0 0.0
        %1375 = vmatpush2.msra.mxu0 0.0
        %1376 = vmatprep.subr.mxu0 0.0
        %1377 = vmatpush2.msra.mxu0 0.0
        %1378 = vmatprep.subr.mxu0 0.0
        %1379 = vmatpush2.msra.mxu0 0.0
        %1380 = vmatprep.subr.mxu0 0.0
        %1381 = vmatpush2.msra.mxu0 0.0
        %1382 = vmatprep.subr.mxu0 0.0
        %1383 = vmatpush2.msra.mxu0 0.0
        %1384 = vmatprep.subr.mxu0 0.0
        %1385 = vmatpush2.msra.mxu0 0.0
        %1386 = vmatprep.subr.mxu0 0.0
        %1387 = vmatpush2.msra.mxu0 0.0
        %1388 = vmatprep.subr.mxu0 0.0
        %1389 = vmatpush2.msra.mxu0 0.0
        %1390 = vmatprep.subr.mxu0 0.0
        %1391 = vmatpush2.msra.mxu0 0.0
        %1392 = vmatprep.subr.mxu0 0.0
        %1393 = vmatpush2.msra.mxu0 0.0
        %1394 = vmatprep.subr.mxu0 0.0
        %1395 = vmatpush2.msra.mxu0 0.0
        %1396 = vmatprep.subr.mxu0 0.0
        %1397 = vmatpush2.msra.mxu0 0.0
        %1398 = vmatprep.subr.mxu0 0.0
        %1399 = vmatpush2.msra.mxu0 0.0
        %1400 = vmatprep.subr.mxu0 0.0
        %1401 = vmatpush2.msra.mxu0 0.0
        %1402 = vmatprep.subr.mxu0 0.0
        %1403 = vmatpush2.msra.mxu0 0.0
        %1404 = vmatprep.mubr.f32.mxu0 0.0
        %1405 = vmatmul.mubr.f32.gmra.mxu0 %v1332
        %v1406 = vpop.f32.mrf.mxu0
        %v1407 = vadd.f32 %v1329, %v1406
        %v1408 = vpop.f32.mrf.mxu0
        %v1409 = vadd.f32 %v1329, %v1408
        %1410 = vdwg.mxu0
        %1411 = vset.pattern.permute.xlu0 14
        %1412 = vperm.xlu0 %1411, %v277
        %v1413 = vpop.permute.xlu0 %1412
        %v1415 = vmul.f32 %v1407, %v1413
        %v1416 = vmul.f32 %v1409, %v1413
        %v1419 = vcombine.low %v1415, %v1416
        %v1421 = vadd.f32 %v1079, %v1419
        %1422 = vst [vmem:[%s270] sm:$0xff] %v1421
        %s1423 = sand.u32 %s161, 1
        %s1424 = scalar_lea.sflag [#allocation4], %s1423
        %s1425 = sand.u32 %s161, 1
        %s1426 = smul.addr %s1425, 8
        %s1427 = scalar_lea.vmem [#allocation7], %s1426
        // Predicated region
        $region53: #{tpu_custom_call.1} parent=43 // pred_check
          %p1428 = pneg %p171
        $region54: #{tpu_custom_call.1} parent=43 // pred_check_branch
          %1430 = sbr.rel (%p1428) target = $region56
        $region55: #{tpu_custom_call.1} parent=43 // pred_region
          %s1432 = ssub.s32 128, 128
          %1433 = vsyncadd %s1424, %s1432
          %s1434 = smul.addr %s22, 2
          %s1435 = smul.addr %s1434, 64
          %s1436 = scalar_lea.hbm %s6, %s1435
          %s1438 = sshll.u32 %s1427, 4
          %s1439 = int_to_ptr.vmem [resolvable:$true] %s1438
          %1441 = dma.vmem_to_hbm [thread:$0]  %s1439, 128, %s1436, %s1424
        $region56: #{tpu_custom_call.1} parent=43 // pred_fallthru
          _
      $region44: #{tpu_custom_call.1} parent=5 // pred_fallthru
        _
      %p1442 = scmp.le.s32.totalorder 2, %s17
      // Predicated region
      $region57: #{tpu_custom_call.1} parent=5 // pred_check
        %p1443 = pneg %p1442
      $region58: #{tpu_custom_call.1} parent=5 // pred_check_branch
        %1445 = sbr.rel (%p1443) target = $region60
      $region59: #{tpu_custom_call.1} parent=5 // pred_region
        %s1446 = ssub.s32 %s17, 2
        // Predicated region
        $region61: #{tpu_custom_call.1} parent=59 // pred_check
          %p1447 = pneg %p177
        $region62: #{tpu_custom_call.1} parent=59 // pred_check_branch
          %1449 = sbr.rel (%p1447) target = $region64
        $region63: #{tpu_custom_call.1} parent=59 // pred_region
          %s1450 = sand.u32 %s162, 1
          %s1451 = scalar_lea.sflag [#allocation4], %s1450
          %s1452 = sand.u32 %s162, 1
          %s1453 = smul.addr %s1452, 8
          %s1454 = scalar_lea.vmem [#allocation7], %s1453
          %1455 = dma.done %s1451, 128
        $region64: #{tpu_custom_call.1} parent=59 // pred_fallthru
          _
      $region60: #{tpu_custom_call.1} parent=5 // pred_fallthru
        _
    $region6: #{tpu_custom_call.1} parent=1 // loop_footer
      %s21 = sadd.s32 1, %s17
    $region7: #{tpu_custom_call.1} parent=1 // loop_footer_branch
      %16 = sbr.rel target = $region3
    $region8: #{tpu_custom_call.1} parent=1 // loop_exit
      _
    %1456 = vsyncpa [#allocation3], 1
    %s1457 = scalar_lea.sflag [#allocation3], 1
    %1458 = vsyncpa %s1457, 1
    %1459 = vsyncpa [#allocation6], 1
    %1460 = vsyncpa [#allocation4], 1
    %s1461 = scalar_lea.sflag [#allocation4], 1
    %1462 = vsyncpa %s1461, 1

</llo_original>
